<compile_context>
chip_gen: v6e
topology: v6e:2x2x1
jax: 0.10.0
libtpu: 0.0.40
codegen_flags: <defaults>
</compile_context>

<pallas_src>
import jax
import jax.numpy as jnp
from jax import lax
from jax.experimental import pallas as pl
from jax.experimental.pallas import tpu as pltpu

# ---- problem sizes --------------------------------------------------------
T = 8                 # frames / sequence length
C, H, W = 3, 16, 16
FEAT = C * H * W      # 768 flattened pixels per frame
EMB = 512             # embedding dim (attn_w is 64x512)
QDIM = 64             # query_vector dim
HID = 32              # linear1 output dim


def _vmem():
    return pl.BlockSpec(memory_space=pltpu.MemorySpace.VMEM)


# ---------------------------------------------------------------------------
# Single fused kernel:
#   e_img  = relu(x_flat @ W_img + b_img)            (T, 512)   stand-in img_model
#   embed  = tanh(e_img @ W_seq + b_seq)             (T, 512)   stand-in seq_model
#   scores = q . embed  (contract EMB)               (1, T)     lane-major
#   attn   = softmax(scores over T)                  (1, T)
#   ctxt   = attn @ embed                            (1, 512)
#   h      = relu(ctxt @ W1 + b1)                    (1, 32)
#   out    = sigmoid(sum(h * w2_row) + b2)           (1, 1)
# ---------------------------------------------------------------------------
def fused_forward_kernel(x_ref, wimg_ref, bimg_ref, wseq_ref, bseq_ref,
                         q_ref, w1_ref, b1_ref, w2_ref, b2_ref, o_ref):
    # frame encoder: bf16 MXU operands, f32 accumulate, f32 elementwise
    x_bf = x_ref[...].astype(jnp.bfloat16)
    e_img = jnp.maximum(
        jnp.dot(x_bf, wimg_ref[...], preferred_element_type=jnp.float32)
        + bimg_ref[...],
        0.0,
    )                                                              # (T, EMB) f32

    # sequence projection
    embed = jnp.tanh(
        jnp.dot(e_img.astype(jnp.bfloat16), wseq_ref[...],
                preferred_element_type=jnp.float32)
        + bseq_ref[...]
    )                                                              # (T, EMB) f32

    # attention scores, lane-major (1, T): contract last dims (no transpose)
    scores = lax.dot_general(
        q_ref[...], embed, (((1,), (1,)), ((), ())),
        preferred_element_type=jnp.float32)                        # (1, T)

    # softmax over T (lane reduction)
    m = jnp.max(scores, axis=1, keepdims=True)
    ex = jnp.exp(scores - m)
    attn = ex / jnp.sum(ex, axis=1, keepdims=True)                 # (1, T)

    # attention-weighted sum as an MXU matmul: (1,T) @ (T,EMB)
    ctxt = jnp.dot(attn, embed, preferred_element_type=jnp.float32)  # (1, EMB)

    # MLP head
    h = jnp.maximum(
        jnp.dot(ctxt, w1_ref[...], preferred_element_type=jnp.float32)
        + b1_ref[...],
        0.0,
    )                                                              # (1, HID)
    logit = jnp.sum(h * w2_ref[...], axis=1, keepdims=True) + b2_ref[...]
    o_ref[...] = jax.nn.sigmoid(logit)                             # (1, 1)


# ---------------------------------------------------------------------------
# Wrapper
# ---------------------------------------------------------------------------
@jax.jit
def model_forward(x, params):
    x_flat = x.reshape(T, FEAT).astype(jnp.float32)
    return pl.pallas_call(
        fused_forward_kernel,
        out_shape=jax.ShapeDtypeStruct((1, 1), jnp.float32),
        in_specs=[_vmem()] * 10,
        out_specs=_vmem(),
    )(x_flat,
      params["w_img"], params["b_img"],
      params["w_seq"], params["b_seq"],
      params["q"],
      params["w1"], params["b1"],
      params["w2_row"], params["b2"])


def init_params(key):
    ks = jax.random.split(key, 9)
    scale = 0.05
    query_vector = jax.random.normal(ks[4], (1, QDIM), jnp.float32)
    attn_w = jax.random.normal(ks[5], (QDIM, EMB), jnp.float32)
    return {
        # stand-in img_model: flatten -> linear(FEAT, 512) -> relu  (bf16 weights)
        "w_img": (scale * jax.random.normal(ks[0], (FEAT, EMB), jnp.float32)
                  ).astype(jnp.bfloat16),
        "b_img": scale * jax.random.normal(ks[1], (1, EMB), jnp.float32),
        # stand-in seq_model: linear(512, 512) -> tanh  (bf16 weights)
        "w_seq": (scale * jax.random.normal(ks[2], (EMB, EMB), jnp.float32)
                  ).astype(jnp.bfloat16),
        "b_seq": scale * jax.random.normal(ks[3], (1, EMB), jnp.float32),
        # q = query_vector @ attn_w is input-independent -> hoisted to init
        "q": query_vector @ attn_w,                                # (1, EMB) f32
        # nn.Linear(512, 32): stored transposed as (512, 32) for x @ W
        "w1": scale * jax.random.normal(ks[6], (EMB, HID), jnp.float32),
        "b1": scale * jax.random.normal(ks[7], (1, HID), jnp.float32),
        # nn.Linear(32, 1): stored as a (1, 32) row -> lane-dense reduction
        "w2_row": scale * jax.random.normal(ks[8], (1, HID), jnp.float32),
        "b2": jnp.zeros((1, 1), jnp.float32),
    }


if __name__ == "__main__":
    key = jax.random.PRNGKey(0)
    k_x, k_p = jax.random.split(key)
    x = jax.random.normal(k_x, (T, C, H, W), jnp.float32)   # NCHW frames
    params = init_params(k_p)

    out = model_forward(x, params)
    jax.block_until_ready(out)

    assert out.shape == (1, 1)
    assert bool(jnp.all(jnp.isfinite(out)))
    assert bool(jnp.all((out >= 0.0) & (out <= 1.0)))
    print("KERNEL_OK")
</pallas_src>

<mosaic_0001>
module attributes {stable_mosaic.version = 11 : i64} {
  func.func @fused_forward_kernel(%arg0: memref<8x768xf32, #tpu.memory_space<vmem>>, %arg1: memref<768x512xbf16, #tpu.memory_space<vmem>>, %arg2: memref<1x512xf32, #tpu.memory_space<vmem>>, %arg3: memref<512x512xbf16, #tpu.memory_space<vmem>>, %arg4: memref<1x512xf32, #tpu.memory_space<vmem>>, %arg5: memref<1x512xf32, #tpu.memory_space<vmem>>, %arg6: memref<512x32xf32, #tpu.memory_space<vmem>>, %arg7: memref<1x32xf32, #tpu.memory_space<vmem>>, %arg8: memref<1x32xf32, #tpu.memory_space<vmem>>, %arg9: memref<1x1xf32, #tpu.memory_space<vmem>>, %arg10: memref<1x1xf32, #tpu.memory_space<vmem>>) attributes {dimension_semantics = [], scalar_prefetch = 0 : i64, scratch_operands = 0 : i64, tpu.core_type = #tpu.core_type<tc>} {
    %c0 = arith.constant 0 : index
    %c0_0 = arith.constant 0 : index
    %0 = vector.load %arg0[%c0, %c0_0] : memref<8x768xf32, #tpu.memory_space<vmem>>, vector<8x768xf32>
    %1 = arith.truncf %0 : vector<8x768xf32> to vector<8x768xbf16>
    %c0_1 = arith.constant 0 : index
    %c0_2 = arith.constant 0 : index
    %2 = vector.load %arg1[%c0_1, %c0_2] : memref<768x512xbf16, #tpu.memory_space<vmem>>, vector<768x512xbf16>
    %cst = arith.constant dense<0.000000e+00> : vector<8x512xf32>
    %3 = tpu.matmul %1, %2, %cst {dimension_numbers = #tpu.dot_dimension_numbers<[1], [0], [0], [1], [0, 0, 1, 1], [], []>} : vector<8x768xbf16>, vector<768x512xbf16>, vector<8x512xf32> -> vector<8x512xf32>
    %c0_3 = arith.constant 0 : index
    %c0_4 = arith.constant 0 : index
    %4 = vector.load %arg2[%c0_3, %c0_4] : memref<1x512xf32, #tpu.memory_space<vmem>>, vector<1x512xf32>
    %5 = vector.broadcast %4 : vector<1x512xf32> to vector<8x512xf32>
    %6 = arith.addf %3, %5 : vector<8x512xf32>
    %cst_5 = arith.constant 0.000000e+00 : f32
    %7 = vector.broadcast %cst_5 : f32 to vector<8x512xf32>
    %8 = arith.maximumf %6, %7 : vector<8x512xf32>
    %9 = arith.truncf %8 : vector<8x512xf32> to vector<8x512xbf16>
    %c0_6 = arith.constant 0 : index
    %c0_7 = arith.constant 0 : index
    %10 = vector.load %arg3[%c0_6, %c0_7] : memref<512x512xbf16, #tpu.memory_space<vmem>>, vector<512x512xbf16>
    %cst_8 = arith.constant dense<0.000000e+00> : vector<8x512xf32>
    %11 = tpu.matmul %9, %10, %cst_8 {dimension_numbers = #tpu.dot_dimension_numbers<[1], [0], [0], [1], [0, 0, 1, 1], [], []>} : vector<8x512xbf16>, vector<512x512xbf16>, vector<8x512xf32> -> vector<8x512xf32>
    %c0_9 = arith.constant 0 : index
    %c0_10 = arith.constant 0 : index
    %12 = vector.load %arg4[%c0_9, %c0_10] : memref<1x512xf32, #tpu.memory_space<vmem>>, vector<1x512xf32>
    %13 = vector.broadcast %12 : vector<1x512xf32> to vector<8x512xf32>
    %14 = arith.addf %11, %13 : vector<8x512xf32>
    %15 = math.tanh %14 : vector<8x512xf32>
    %c0_11 = arith.constant 0 : index
    %c0_12 = arith.constant 0 : index
    %16 = vector.load %arg5[%c0_11, %c0_12] : memref<1x512xf32, #tpu.memory_space<vmem>>, vector<1x512xf32>
    %cst_13 = arith.constant dense<0.000000e+00> : vector<1x8xf32>
    %17 = tpu.matmul %16, %15, %cst_13 {dimension_numbers = #tpu.dot_dimension_numbers<[1], [1], [0], [0], [0, 0, 1, 0], [], []>} : vector<1x512xf32>, vector<8x512xf32>, vector<1x8xf32> -> vector<1x8xf32>
    %cst_14 = arith.constant dense<0xFF800000> : vector<1xf32>
    %18 = vector.multi_reduction <maximumf>, %17, %cst_14 [1] : vector<1x8xf32> to vector<1xf32>
    %19 = vector.shape_cast %18 : vector<1xf32> to vector<1x1xf32>
    %20 = vector.broadcast %19 : vector<1x1xf32> to vector<1x8xf32>
    %21 = arith.subf %17, %20 : vector<1x8xf32>
    %22 = math.exp %21 : vector<1x8xf32>
    %cst_15 = arith.constant dense<0.000000e+00> : vector<1xf32>
    %23 = vector.multi_reduction <add>, %22, %cst_15 [1] : vector<1x8xf32> to vector<1xf32>
    %24 = vector.shape_cast %23 : vector<1xf32> to vector<1x1xf32>
    %25 = vector.broadcast %24 : vector<1x1xf32> to vector<1x8xf32>
    %26 = arith.divf %22, %25 : vector<1x8xf32>
    %cst_16 = arith.constant dense<0.000000e+00> : vector<1x512xf32>
    %27 = tpu.matmul %26, %15, %cst_16 {dimension_numbers = #tpu.dot_dimension_numbers<[1], [0], [0], [1], [0, 0, 1, 1], [], []>} : vector<1x8xf32>, vector<8x512xf32>, vector<1x512xf32> -> vector<1x512xf32>
    %c0_17 = arith.constant 0 : index
    %c0_18 = arith.constant 0 : index
    %28 = vector.load %arg6[%c0_17, %c0_18] : memref<512x32xf32, #tpu.memory_space<vmem>>, vector<512x32xf32>
    %cst_19 = arith.constant dense<0.000000e+00> : vector<1x32xf32>
    %29 = tpu.matmul %27, %28, %cst_19 {dimension_numbers = #tpu.dot_dimension_numbers<[1], [0], [0], [1], [0, 0, 1, 1], [], []>} : vector<1x512xf32>, vector<512x32xf32>, vector<1x32xf32> -> vector<1x32xf32>
    %c0_20 = arith.constant 0 : index
    %c0_21 = arith.constant 0 : index
    %30 = vector.load %arg7[%c0_20, %c0_21] : memref<1x32xf32, #tpu.memory_space<vmem>>, vector<1x32xf32>
    %31 = arith.addf %29, %30 : vector<1x32xf32>
    %cst_22 = arith.constant 0.000000e+00 : f32
    %32 = vector.broadcast %cst_22 : f32 to vector<1x32xf32>
    %33 = arith.maximumf %31, %32 : vector<1x32xf32>
    %c0_23 = arith.constant 0 : index
    %c0_24 = arith.constant 0 : index
    %34 = vector.load %arg8[%c0_23, %c0_24] : memref<1x32xf32, #tpu.memory_space<vmem>>, vector<1x32xf32>
    %35 = arith.mulf %33, %34 : vector<1x32xf32>
    %cst_25 = arith.constant dense<0.000000e+00> : vector<1xf32>
    %36 = vector.multi_reduction <add>, %35, %cst_25 [1] : vector<1x32xf32> to vector<1xf32>
    %37 = vector.shape_cast %36 : vector<1xf32> to vector<1x1xf32>
    %c0_26 = arith.constant 0 : index
    %c0_27 = arith.constant 0 : index
    %38 = vector.load %arg9[%c0_26, %c0_27] : memref<1x1xf32, #tpu.memory_space<vmem>>, vector<1x1xf32>
    %39 = arith.addf %37, %38 : vector<1x1xf32>
    %40 = arith.negf %39 : vector<1x1xf32>
    %41 = math.exp %40 : vector<1x1xf32>
    %cst_28 = arith.constant 1.000000e+00 : f32
    %42 = vector.broadcast %cst_28 : f32 to vector<1x1xf32>
    %43 = arith.addf %42, %41 : vector<1x1xf32>
    %44 = arith.divf %42, %43 : vector<1x1xf32>
    %c0_29 = arith.constant 0 : index
    %c0_30 = arith.constant 0 : index
    %45 = vector.load %arg10[%c0_29, %c0_30] : memref<1x1xf32, #tpu.memory_space<vmem>>, vector<1x1xf32>
    tpu.vector_store %arg10[%c0_29, %c0_30], %44 {strides = array<i32>} : memref<1x1xf32, #tpu.memory_space<vmem>>, vector<1x1xf32>,
    return
  }
}

</mosaic_0001>

<llo_original>
// kernel: model_forward.1
$region0: #{model_forward.1}
  #allocation0 [shape = 'u32[]', space=smem, size = 0x4, offset = 0x4, fixed_abs, tag = 'smem constant byte address 0x4 - core index']
  #allocation1 [shape = 'u32[144,128]{1,0:T(1,128)}', space=vmem, size = 0x12000, scoped, tag = 'internal scratch']
  #allocation2 [shape = 'f32[1,1]{1,0:T(1,128)S(1)}', space=vmem, size = 0x200, scoped, tag = 'scoped memory for model_forward.1']
  %s0 = inlined_call_operand.vmem [shape: f32[8,768], index: 0, kind: input, shape index: {}]
  %s1 = inlined_call_operand.hbm [shape: bf16[768,512], index: 1, kind: input, shape index: {}]
  %s2 = inlined_call_operand.vmem [shape: f32[1,512], index: 2, kind: input, shape index: {}]
  %s3 = inlined_call_operand.vmem [shape: bf16[512,512], index: 3, kind: input, shape index: {}]
  %s4 = inlined_call_operand.vmem [shape: f32[1,512], index: 4, kind: input, shape index: {}]
  %s5 = inlined_call_operand.vmem [shape: f32[1,512], index: 5, kind: input, shape index: {}]
  %s6 = inlined_call_operand.vmem [shape: f32[512,32], index: 6, kind: input, shape index: {}]
  %s7 = inlined_call_operand.vmem [shape: f32[1,32], index: 7, kind: input, shape index: {}]
  %s8 = inlined_call_operand.vmem [shape: f32[1,32], index: 8, kind: input, shape index: {}]
  %s9 = inlined_call_operand.<no memory space> [shape: f32[1,1], index: 9, kind: input, shape index: {}]
  %s10 = inlined_call_operand.hbm [shape: f32[1,1], index: 10, kind: output, shape index: {}]
  %s11 = sld [smem:[#allocation0]]
  $region54: #{model_forward.1} parent=0
    _
  %s13 = ssub.s32 1, %s11
  %s14 = scalar_select 0, %s13, %s11
  %v15 = vstv %s9
  %16 = vst [vmem:[#allocation2] sm:$0x1] %v15
  $region1: #{model_forward.1} parent=0
    #allocation3 [shape = 'u8[786432]{0}', space=vmem, size = 0xc0000, scoped, tag = 'input window, operand 1, single buffered']
    #allocation4 [shape = 's32[1]{0}', space=sflag, size = 0x4, scoped, tag = 'scoped memory for model_forward.1']
    #allocation5 [shape = 's32[1]{0}', space=sflag, size = 0x4, scoped, tag = 'scoped memory for model_forward.1']
    #allocation6 [shape = 'u8[512]{0}', space=vmem, size = 0x400, scoped, tag = 'output window, operand 0, single buffered']
    %17 = vsyncpa [#allocation4], 0
    %18 = vsyncpa [#allocation5], 0
    // Predicated region
    $region2: #{model_forward.1} parent=1 // pred_check
      _
    $region3: #{model_forward.1} parent=1 // pred_check_branch
      %20 = sbr.rel (0) target = $region5
    $region4: #{model_forward.1} parent=1 // pred_region
      _
    $region5: #{model_forward.1} parent=1 // pred_fallthru
      _
    // Predicated region
    $region6: #{model_forward.1} parent=1 // pred_check
      _
    $region7: #{model_forward.1} parent=1 // pred_check_branch
      %22 = sbr.rel (0) target = $region9
    $region8: #{model_forward.1} parent=1 // pred_region
      %s24 = ssub.s32 24576, 24576
      %25 = vsyncadd [#allocation4], %s24
      %s26 = sshll.u32 [#allocation3], 4
      %s27 = int_to_ptr.vmem [resolvable:$true] %s26
      %32 = dma.hbm_to_vmem [thread:$0]  %s1, 24576, %s27, [#allocation4], 256, 256, 16
    $region9: #{model_forward.1} parent=1 // pred_fallthru
      _
    // Predicated region
    $region10: #{model_forward.1} parent=1 // pred_check
      _
    $region11: #{model_forward.1} parent=1 // pred_check_branch
      %34 = sbr.rel (0) target = $region13
    $region12: #{model_forward.1} parent=1 // pred_region
      _
    $region13: #{model_forward.1} parent=1 // pred_fallthru
      _
    // Predicated region
    $region14: #{model_forward.1} parent=1 // pred_check
      _
    $region15: #{model_forward.1} parent=1 // pred_check_branch
      %36 = sbr.rel (0) target = $region17
    $region16: #{model_forward.1} parent=1 // pred_region
      _
    $region17: #{model_forward.1} parent=1 // pred_fallthru
      _
    // Predicated region
    $region18: #{model_forward.1} parent=1 // pred_check
      _
    $region19: #{model_forward.1} parent=1 // pred_check_branch
      %38 = sbr.rel (0) target = $region21
    $region20: #{model_forward.1} parent=1 // pred_region
      _
    $region21: #{model_forward.1} parent=1 // pred_fallthru
      _
    // Predicated region
    $region22: #{model_forward.1} parent=1 // pred_check
      _
    $region23: #{model_forward.1} parent=1 // pred_check_branch
      %40 = sbr.rel (0) target = $region25
    $region24: #{model_forward.1} parent=1 // pred_region
      _
    $region25: #{model_forward.1} parent=1 // pred_fallthru
      _
    // Predicated region
    $region26: #{model_forward.1} parent=1 // pred_check
      _
    $region27: #{model_forward.1} parent=1 // pred_check_branch
      %42 = sbr.rel (0) target = $region29
    $region28: #{model_forward.1} parent=1 // pred_region
      _
    $region29: #{model_forward.1} parent=1 // pred_fallthru
      _
    // Predicated region
    $region30: #{model_forward.1} parent=1 // pred_check
      _
    $region31: #{model_forward.1} parent=1 // pred_check_branch
      %44 = sbr.rel (0) target = $region33
    $region32: #{model_forward.1} parent=1 // pred_region
      _
    $region33: #{model_forward.1} parent=1 // pred_fallthru
      _
    // Predicated region
    $region34: #{model_forward.1} parent=1 // pred_check
      _
    $region35: #{model_forward.1} parent=1 // pred_check_branch
      %46 = sbr.rel (0) target = $region37
    $region36: #{model_forward.1} parent=1 // pred_region
      _
    $region37: #{model_forward.1} parent=1 // pred_fallthru
      _
    // Predicated region
    $region38: #{model_forward.1} parent=1 // pred_check
      _
    $region39: #{model_forward.1} parent=1 // pred_check_branch
      %48 = sbr.rel (0) target = $region41
    $region40: #{model_forward.1} parent=1 // pred_region
      _
    $region41: #{model_forward.1} parent=1 // pred_fallthru
      _
    // Predicated region
    $region42: #{model_forward.1} parent=1 // pred_check
      _
    $region43: #{model_forward.1} parent=1 // pred_check_branch
      %50 = sbr.rel (0) target = $region45
    $region44: #{model_forward.1} parent=1 // pred_region
      %51 = dma.done [#allocation4], 24576
    $region45: #{model_forward.1} parent=1 // pred_fallthru
      _
    %v52 = vld [vmem:[%s0] sm:$0xff]
    %v53 = vld [vmem:[%s0 + $0x8] sm:$0xff]
    %v54 = vld [vmem:[%s0 + $0x10] sm:$0xff]
    %v55 = vld [vmem:[%s0 + $0x18] sm:$0xff]
    %v56 = vld [vmem:[%s0 + $0x20] sm:$0xff]
    %v57 = vld [vmem:[%s0 + $0x28] sm:$0xff]
    %v58 = vpack.c.bf16 %v52, %v52
    %v59 = vpack.c.bf16 %v53, %v53
    %v60 = vpack.c.bf16 %v54, %v54
    %v61 = vpack.c.bf16 %v55, %v55
    %v62 = vpack.c.bf16 %v56, %v56
    %v63 = vpack.c.bf16 %v57, %v57
    %v64 = vld [vmem:[#allocation3] sm:$0xff]
    %v65 = vld [vmem:[#allocation3 + $0x8] sm:$0xff]
    %v66 = vld [vmem:[#allocation3 + $0x10] sm:$0xff]
    %v67 = vld [vmem:[#allocation3 + $0x18] sm:$0xff]
    %v68 = vld [vmem:[#allocation3 + $0x20] sm:$0xff]
    %v69 = vld [vmem:[#allocation3 + $0x28] sm:$0xff]
    %v70 = vld [vmem:[#allocation3 + $0x30] sm:$0xff]
    %v71 = vld [vmem:[#allocation3 + $0x38] sm:$0xff]
    %v72 = vld [vmem:[#allocation3 + $0x40] sm:$0xff]
    %v73 = vld [vmem:[#allocation3 + $0x48] sm:$0xff]
    %v74 = vld [vmem:[#allocation3 + $0x50] sm:$0xff]
    %v75 = vld [vmem:[#allocation3 + $0x58] sm:$0xff]
    %v76 = vld [vmem:[#allocation3 + $0x60] sm:$0xff]
    %v77 = vld [vmem:[#allocation3 + $0x68] sm:$0xff]
    %v78 = vld [vmem:[#allocation3 + $0x70] sm:$0xff]
    %v79 = vld [vmem:[#allocation3 + $0x78] sm:$0xff]
    %v80 = vld [vmem:[#allocation3 + $0x80] sm:$0xff]
    %v81 = vld [vmem:[#allocation3 + $0x88] sm:$0xff]
    %v82 = vld [vmem:[#allocation3 + $0x90] sm:$0xff]
    %v83 = vld [vmem:[#allocation3 + $0x98] sm:$0xff]
    %v84 = vld [vmem:[#allocation3 + $0xa0] sm:$0xff]
    %v85 = vld [vmem:[#allocation3 + $0xa8] sm:$0xff]
    %v86 = vld [vmem:[#allocation3 + $0xb0] sm:$0xff]
    %v87 = vld [vmem:[#allocation3 + $0xb8] sm:$0xff]
    %v88 = vld [vmem:[#allocation3 + $0xc0] sm:$0xff]
    %v89 = vld [vmem:[#allocation3 + $0xc8] sm:$0xff]
    %v90 = vld [vmem:[#allocation3 + $0xd0] sm:$0xff]
    %v91 = vld [vmem:[#allocation3 + $0xd8] sm:$0xff]
    %v92 = vld [vmem:[#allocation3 + $0xe0] sm:$0xff]
    %v93 = vld [vmem:[#allocation3 + $0xe8] sm:$0xff]
    %v94 = vld [vmem:[#allocation3 + $0xf0] sm:$0xff]
    %v95 = vld [vmem:[#allocation3 + $0xf8] sm:$0xff]
    %v96 = vld [vmem:[#allocation3 + $0x100] sm:$0xff]
    %v97 = vld [vmem:[#allocation3 + $0x108] sm:$0xff]
    %v98 = vld [vmem:[#allocation3 + $0x110] sm:$0xff]
    %v99 = vld [vmem:[#allocation3 + $0x118] sm:$0xff]
    %v100 = vld [vmem:[#allocation3 + $0x120] sm:$0xff]
    %v101 = vld [vmem:[#allocation3 + $0x128] sm:$0xff]
    %v102 = vld [vmem:[#allocation3 + $0x130] sm:$0xff]
    %v103 = vld [vmem:[#allocation3 + $0x138] sm:$0xff]
    %v104 = vld [vmem:[#allocation3 + $0x140] sm:$0xff]
    %v105 = vld [vmem:[#allocation3 + $0x148] sm:$0xff]
    %v106 = vld [vmem:[#allocation3 + $0x150] sm:$0xff]
    %v107 = vld [vmem:[#allocation3 + $0x158] sm:$0xff]
    %v108 = vld [vmem:[#allocation3 + $0x160] sm:$0xff]
    %v109 = vld [vmem:[#allocation3 + $0x168] sm:$0xff]
    %v110 = vld [vmem:[#allocation3 + $0x170] sm:$0xff]
    %v111 = vld [vmem:[#allocation3 + $0x178] sm:$0xff]
    %v112 = vld [vmem:[#allocation3 + $0x180] sm:$0xff]
    %v113 = vld [vmem:[#allocation3 + $0x188] sm:$0xff]
    %v114 = vld [vmem:[#allocation3 + $0x190] sm:$0xff]
    %v115 = vld [vmem:[#allocation3 + $0x198] sm:$0xff]
    %v116 = vld [vmem:[#allocation3 + $0x1a0] sm:$0xff]
    %v117 = vld [vmem:[#allocation3 + $0x1a8] sm:$0xff]
    %v118 = vld [vmem:[#allocation3 + $0x1b0] sm:$0xff]
    %v119 = vld [vmem:[#allocation3 + $0x1b8] sm:$0xff]
    %v120 = vld [vmem:[#allocation3 + $0x1c0] sm:$0xff]
    %v121 = vld [vmem:[#allocation3 + $0x1c8] sm:$0xff]
    %v122 = vld [vmem:[#allocation3 + $0x1d0] sm:$0xff]
    %v123 = vld [vmem:[#allocation3 + $0x1d8] sm:$0xff]
    %v124 = vld [vmem:[#allocation3 + $0x1e0] sm:$0xff]
    %v125 = vld [vmem:[#allocation3 + $0x1e8] sm:$0xff]
    %v126 = vld [vmem:[#allocation3 + $0x1f0] sm:$0xff]
    %v127 = vld [vmem:[#allocation3 + $0x1f8] sm:$0xff]
    %v128 = vld [vmem:[#allocation3 + $0x200] sm:$0xff]
    %v129 = vld [vmem:[#allocation3 + $0x208] sm:$0xff]
    %v130 = vld [vmem:[#allocation3 + $0x210] sm:$0xff]
    %v131 = vld [vmem:[#allocation3 + $0x218] sm:$0xff]
    %v132 = vld [vmem:[#allocation3 + $0x220] sm:$0xff]
    %v133 = vld [vmem:[#allocation3 + $0x228] sm:$0xff]
    %v134 = vld [vmem:[#allocation3 + $0x230] sm:$0xff]
    %v135 = vld [vmem:[#allocation3 + $0x238] sm:$0xff]
    %v136 = vld [vmem:[#allocation3 + $0x240] sm:$0xff]
    %v137 = vld [vmem:[#allocation3 + $0x248] sm:$0xff]
    %v138 = vld [vmem:[#allocation3 + $0x250] sm:$0xff]
    %v139 = vld [vmem:[#allocation3 + $0x258] sm:$0xff]
    %v140 = vld [vmem:[#allocation3 + $0x260] sm:$0xff]
    %v141 = vld [vmem:[#allocation3 + $0x268] sm:$0xff]
    %v142 = vld [vmem:[#allocation3 + $0x270] sm:$0xff]
    %v143 = vld [vmem:[#allocation3 + $0x278] sm:$0xff]
    %v144 = vld [vmem:[#allocation3 + $0x280] sm:$0xff]
    %v145 = vld [vmem:[#allocation3 + $0x288] sm:$0xff]
    %v146 = vld [vmem:[#allocation3 + $0x290] sm:$0xff]
    %v147 = vld [vmem:[#allocation3 + $0x298] sm:$0xff]
    %v148 = vld [vmem:[#allocation3 + $0x2a0] sm:$0xff]
    %v149 = vld [vmem:[#allocation3 + $0x2a8] sm:$0xff]
    %v150 = vld [vmem:[#allocation3 + $0x2b0] sm:$0xff]
    %v151 = vld [vmem:[#allocation3 + $0x2b8] sm:$0xff]
    %v152 = vld [vmem:[#allocation3 + $0x2c0] sm:$0xff]
    %v153 = vld [vmem:[#allocation3 + $0x2c8] sm:$0xff]
    %v154 = vld [vmem:[#allocation3 + $0x2d0] sm:$0xff]
    %v155 = vld [vmem:[#allocation3 + $0x2d8] sm:$0xff]
    %v156 = vld [vmem:[#allocation3 + $0x2e0] sm:$0xff]
    %v157 = vld [vmem:[#allocation3 + $0x2e8] sm:$0xff]
    %v158 = vld [vmem:[#allocation3 + $0x2f0] sm:$0xff]
    %v159 = vld [vmem:[#allocation3 + $0x2f8] sm:$0xff]
    %v160 = vld [vmem:[#allocation3 + $0x300] sm:$0xff]
    %v161 = vld [vmem:[#allocation3 + $0x308] sm:$0xff]
    %v162 = vld [vmem:[#allocation3 + $0x310] sm:$0xff]
    %v163 = vld [vmem:[#allocation3 + $0x318] sm:$0xff]
    %v164 = vld [vmem:[#allocation3 + $0x320] sm:$0xff]
    %v165 = vld [vmem:[#allocation3 + $0x328] sm:$0xff]
    %v166 = vld [vmem:[#allocation3 + $0x330] sm:$0xff]
    %v167 = vld [vmem:[#allocation3 + $0x338] sm:$0xff]
    %v168 = vld [vmem:[#allocation3 + $0x340] sm:$0xff]
    %v169 = vld [vmem:[#allocation3 + $0x348] sm:$0xff]
    %v170 = vld [vmem:[#allocation3 + $0x350] sm:$0xff]
    %v171 = vld [vmem:[#allocation3 + $0x358] sm:$0xff]
    %v172 = vld [vmem:[#allocation3 + $0x360] sm:$0xff]
    %v173 = vld [vmem:[#allocation3 + $0x368] sm:$0xff]
    %v174 = vld [vmem:[#allocation3 + $0x370] sm:$0xff]
    %v175 = vld [vmem:[#allocation3 + $0x378] sm:$0xff]
    %v176 = vld [vmem:[#allocation3 + $0x380] sm:$0xff]
    %v177 = vld [vmem:[#allocation3 + $0x388] sm:$0xff]
    %v178 = vld [vmem:[#allocation3 + $0x390] sm:$0xff]
    %v179 = vld [vmem:[#allocation3 + $0x398] sm:$0xff]
    %v180 = vld [vmem:[#allocation3 + $0x3a0] sm:$0xff]
    %v181 = vld [vmem:[#allocation3 + $0x3a8] sm:$0xff]
    %v182 = vld [vmem:[#allocation3 + $0x3b0] sm:$0xff]
    %v183 = vld [vmem:[#allocation3 + $0x3b8] sm:$0xff]
    %v184 = vld [vmem:[#allocation3 + $0x3c0] sm:$0xff]
    %v185 = vld [vmem:[#allocation3 + $0x3c8] sm:$0xff]
    %v186 = vld [vmem:[#allocation3 + $0x3d0] sm:$0xff]
    %v187 = vld [vmem:[#allocation3 + $0x3d8] sm:$0xff]
    %v188 = vld [vmem:[#allocation3 + $0x3e0] sm:$0xff]
    %v189 = vld [vmem:[#allocation3 + $0x3e8] sm:$0xff]
    %v190 = vld [vmem:[#allocation3 + $0x3f0] sm:$0xff]
    %v191 = vld [vmem:[#allocation3 + $0x3f8] sm:$0xff]
    %v192 = vld [vmem:[#allocation3 + $0x400] sm:$0xff]
    %v193 = vld [vmem:[#allocation3 + $0x408] sm:$0xff]
    %v194 = vld [vmem:[#allocation3 + $0x410] sm:$0xff]
    %v195 = vld [vmem:[#allocation3 + $0x418] sm:$0xff]
    %v196 = vld [vmem:[#allocation3 + $0x420] sm:$0xff]
    %v197 = vld [vmem:[#allocation3 + $0x428] sm:$0xff]
    %v198 = vld [vmem:[#allocation3 + $0x430] sm:$0xff]
    %v199 = vld [vmem:[#allocation3 + $0x438] sm:$0xff]
    %v200 = vld [vmem:[#allocation3 + $0x440] sm:$0xff]
    %v201 = vld [vmem:[#allocation3 + $0x448] sm:$0xff]
    %v202 = vld [vmem:[#allocation3 + $0x450] sm:$0xff]
    %v203 = vld [vmem:[#allocation3 + $0x458] sm:$0xff]
    %v204 = vld [vmem:[#allocation3 + $0x460] sm:$0xff]
    %v205 = vld [vmem:[#allocation3 + $0x468] sm:$0xff]
    %v206 = vld [vmem:[#allocation3 + $0x470] sm:$0xff]
    %v207 = vld [vmem:[#allocation3 + $0x478] sm:$0xff]
    %v208 = vld [vmem:[#allocation3 + $0x480] sm:$0xff]
    %v209 = vld [vmem:[#allocation3 + $0x488] sm:$0xff]
    %v210 = vld [vmem:[#allocation3 + $0x490] sm:$0xff]
    %v211 = vld [vmem:[#allocation3 + $0x498] sm:$0xff]
    %v212 = vld [vmem:[#allocation3 + $0x4a0] sm:$0xff]
    %v213 = vld [vmem:[#allocation3 + $0x4a8] sm:$0xff]
    %v214 = vld [vmem:[#allocation3 + $0x4b0] sm:$0xff]
    %v215 = vld [vmem:[#allocation3 + $0x4b8] sm:$0xff]
    %v216 = vld [vmem:[#allocation3 + $0x4c0] sm:$0xff]
    %v217 = vld [vmem:[#allocation3 + $0x4c8] sm:$0xff]
    %v218 = vld [vmem:[#allocation3 + $0x4d0] sm:$0xff]
    %v219 = vld [vmem:[#allocation3 + $0x4d8] sm:$0xff]
    %v220 = vld [vmem:[#allocation3 + $0x4e0] sm:$0xff]
    %v221 = vld [vmem:[#allocation3 + $0x4e8] sm:$0xff]
    %v222 = vld [vmem:[#allocation3 + $0x4f0] sm:$0xff]
    %v223 = vld [vmem:[#allocation3 + $0x4f8] sm:$0xff]
    %v224 = vld [vmem:[#allocation3 + $0x500] sm:$0xff]
    %v225 = vld [vmem:[#allocation3 + $0x508] sm:$0xff]
    %v226 = vld [vmem:[#allocation3 + $0x510] sm:$0xff]
    %v227 = vld [vmem:[#allocation3 + $0x518] sm:$0xff]
    %v228 = vld [vmem:[#allocation3 + $0x520] sm:$0xff]
    %v229 = vld [vmem:[#allocation3 + $0x528] sm:$0xff]
    %v230 = vld [vmem:[#allocation3 + $0x530] sm:$0xff]
    %v231 = vld [vmem:[#allocation3 + $0x538] sm:$0xff]
    %v232 = vld [vmem:[#allocation3 + $0x540] sm:$0xff]
    %v233 = vld [vmem:[#allocation3 + $0x548] sm:$0xff]
    %v234 = vld [vmem:[#allocation3 + $0x550] sm:$0xff]
    %v235 = vld [vmem:[#allocation3 + $0x558] sm:$0xff]
    %v236 = vld [vmem:[#allocation3 + $0x560] sm:$0xff]
    %v237 = vld [vmem:[#allocation3 + $0x568] sm:$0xff]
    %v238 = vld [vmem:[#allocation3 + $0x570] sm:$0xff]
    %v239 = vld [vmem:[#allocation3 + $0x578] sm:$0xff]
    %v240 = vld [vmem:[#allocation3 + $0x580] sm:$0xff]
    %v241 = vld [vmem:[#allocation3 + $0x588] sm:$0xff]
    %v242 = vld [vmem:[#allocation3 + $0x590] sm:$0xff]
    %v243 = vld [vmem:[#allocation3 + $0x598] sm:$0xff]
    %v244 = vld [vmem:[#allocation3 + $0x5a0] sm:$0xff]
    %v245 = vld [vmem:[#allocation3 + $0x5a8] sm:$0xff]
    %v246 = vld [vmem:[#allocation3 + $0x5b0] sm:$0xff]
    %v247 = vld [vmem:[#allocation3 + $0x5b8] sm:$0xff]
    %v248 = vld [vmem:[#allocation3 + $0x5c0] sm:$0xff]
    %v249 = vld [vmem:[#allocation3 + $0x5c8] sm:$0xff]
    %v250 = vld [vmem:[#allocation3 + $0x5d0] sm:$0xff]
    %v251 = vld [vmem:[#allocation3 + $0x5d8] sm:$0xff]
    %v252 = vld [vmem:[#allocation3 + $0x5e0] sm:$0xff]
    %v253 = vld [vmem:[#allocation3 + $0x5e8] sm:$0xff]
    %v254 = vld [vmem:[#allocation3 + $0x5f0] sm:$0xff]
    %v255 = vld [vmem:[#allocation3 + $0x5f8] sm:$0xff]
    %v256 = vld [vmem:[%s2] sm:$0xf]
    %v258 = vlaneseq
    %v259 = vshrl.u32 %v258, 7
    %v260 = vsub.s32 0, %v259
    %v261 = vrot.slane %v256, %v260
    %v262 = vlaneseq
    %v263 = vshrl.u32 %v262, 7
    %v264 = vsub.s32 1, %v263
    %v265 = vrot.slane %v256, %v264
    %v266 = vlaneseq
    %v267 = vshrl.u32 %v266, 7
    %v268 = vsub.s32 2, %v267
    %v269 = vrot.slane %v256, %v268
    %v270 = vlaneseq
    %v271 = vshrl.u32 %v270, 7
    %v272 = vsub.s32 3, %v271
    %v273 = vrot.slane %v256, %v272
    %v470 = vunpack.c.l.b16 %v64
    %v471 = vunpack.c.h.b16 %v64
    %v472 = vunpack.c.l.b16 %v65
    %v473 = vunpack.c.h.b16 %v65
    %v474 = vunpack.c.l.b16 %v66
    %v475 = vunpack.c.h.b16 %v66
    %v476 = vunpack.c.l.b16 %v67
    %v477 = vunpack.c.h.b16 %v67
    %v478 = vunpack.c.l.b16 %v68
    %v479 = vunpack.c.h.b16 %v68
    %v480 = vunpack.c.l.b16 %v69
    %v481 = vunpack.c.h.b16 %v69
    %v482 = vunpack.c.l.b16 %v70
    %v483 = vunpack.c.h.b16 %v70
    %v484 = vunpack.c.l.b16 %v71
    %v485 = vunpack.c.h.b16 %v71
    %v486 = vunpack.c.l.b16 %v72
    %v487 = vunpack.c.h.b16 %v72
    %v488 = vunpack.c.l.b16 %v73
    %v489 = vunpack.c.h.b16 %v73
    %v490 = vunpack.c.l.b16 %v74
    %v491 = vunpack.c.h.b16 %v74
    %v492 = vunpack.c.l.b16 %v75
    %v493 = vunpack.c.h.b16 %v75
    %v494 = vunpack.c.l.b16 %v76
    %v495 = vunpack.c.h.b16 %v76
    %v496 = vunpack.c.l.b16 %v77
    %v497 = vunpack.c.h.b16 %v77
    %v498 = vunpack.c.l.b16 %v78
    %v499 = vunpack.c.h.b16 %v78
    %v500 = vunpack.c.l.b16 %v79
    %v501 = vunpack.c.h.b16 %v79
    %v502 = vunpack.c.l.b16 %v80
    %v503 = vunpack.c.h.b16 %v80
    %v504 = vunpack.c.l.b16 %v81
    %v505 = vunpack.c.h.b16 %v81
    %v506 = vunpack.c.l.b16 %v82
    %v507 = vunpack.c.h.b16 %v82
    %v508 = vunpack.c.l.b16 %v83
    %v509 = vunpack.c.h.b16 %v83
    %v510 = vunpack.c.l.b16 %v84
    %v511 = vunpack.c.h.b16 %v84
    %v512 = vunpack.c.l.b16 %v85
    %v513 = vunpack.c.h.b16 %v85
    %v514 = vunpack.c.l.b16 %v86
    %v515 = vunpack.c.h.b16 %v86
    %v516 = vunpack.c.l.b16 %v87
    %v517 = vunpack.c.h.b16 %v87
    %v518 = vunpack.c.l.b16 %v88
    %v519 = vunpack.c.h.b16 %v88
    %v520 = vunpack.c.l.b16 %v89
    %v521 = vunpack.c.h.b16 %v89
    %v522 = vunpack.c.l.b16 %v90
    %v523 = vunpack.c.h.b16 %v90
    %v524 = vunpack.c.l.b16 %v91
    %v525 = vunpack.c.h.b16 %v91
    %v526 = vunpack.c.l.b16 %v92
    %v527 = vunpack.c.h.b16 %v92
    %v528 = vunpack.c.l.b16 %v93
    %v529 = vunpack.c.h.b16 %v93
    %v530 = vunpack.c.l.b16 %v94
    %v531 = vunpack.c.h.b16 %v94
    %v532 = vunpack.c.l.b16 %v95
    %v533 = vunpack.c.h.b16 %v95
    %v534 = vunpack.c.l.b16 %v96
    %v535 = vunpack.c.h.b16 %v96
    %v536 = vunpack.c.l.b16 %v97
    %v537 = vunpack.c.h.b16 %v97
    %v538 = vunpack.c.l.b16 %v98
    %v539 = vunpack.c.h.b16 %v98
    %v540 = vunpack.c.l.b16 %v99
    %v541 = vunpack.c.h.b16 %v99
    %v542 = vunpack.c.l.b16 %v100
    %v543 = vunpack.c.h.b16 %v100
    %v544 = vunpack.c.l.b16 %v101
    %v545 = vunpack.c.h.b16 %v101
    %v546 = vunpack.c.l.b16 %v102
    %v547 = vunpack.c.h.b16 %v102
    %v548 = vunpack.c.l.b16 %v103
    %v549 = vunpack.c.h.b16 %v103
    %v550 = vunpack.c.l.b16 %v104
    %v551 = vunpack.c.h.b16 %v104
    %v552 = vunpack.c.l.b16 %v105
    %v553 = vunpack.c.h.b16 %v105
    %v554 = vunpack.c.l.b16 %v106
    %v555 = vunpack.c.h.b16 %v106
    %v556 = vunpack.c.l.b16 %v107
    %v557 = vunpack.c.h.b16 %v107
    %v558 = vunpack.c.l.b16 %v108
    %v559 = vunpack.c.h.b16 %v108
    %v560 = vunpack.c.l.b16 %v109
    %v561 = vunpack.c.h.b16 %v109
    %v562 = vunpack.c.l.b16 %v110
    %v563 = vunpack.c.h.b16 %v110
    %v564 = vunpack.c.l.b16 %v111
    %v565 = vunpack.c.h.b16 %v111
    %v566 = vunpack.c.l.b16 %v112
    %v567 = vunpack.c.h.b16 %v112
    %v568 = vunpack.c.l.b16 %v113
    %v569 = vunpack.c.h.b16 %v113
    %v570 = vunpack.c.l.b16 %v114
    %v571 = vunpack.c.h.b16 %v114
    %v572 = vunpack.c.l.b16 %v115
    %v573 = vunpack.c.h.b16 %v115
    %v574 = vunpack.c.l.b16 %v116
    %v575 = vunpack.c.h.b16 %v116
    %v576 = vunpack.c.l.b16 %v117
    %v577 = vunpack.c.h.b16 %v117
    %v578 = vunpack.c.l.b16 %v118
    %v579 = vunpack.c.h.b16 %v118
    %v580 = vunpack.c.l.b16 %v119
    %v581 = vunpack.c.h.b16 %v119
    %v582 = vunpack.c.l.b16 %v120
    %v583 = vunpack.c.h.b16 %v120
    %v584 = vunpack.c.l.b16 %v121
    %v585 = vunpack.c.h.b16 %v121
    %v586 = vunpack.c.l.b16 %v122
    %v587 = vunpack.c.h.b16 %v122
    %v588 = vunpack.c.l.b16 %v123
    %v589 = vunpack.c.h.b16 %v123
    %v590 = vunpack.c.l.b16 %v124
    %v591 = vunpack.c.h.b16 %v124
    %v592 = vunpack.c.l.b16 %v125
    %v593 = vunpack.c.h.b16 %v125
    %v594 = vunpack.c.l.b16 %v126
    %v595 = vunpack.c.h.b16 %v126
    %v596 = vunpack.c.l.b16 %v127
    %v597 = vunpack.c.h.b16 %v127
    %v598 = vunpack.c.l.b16 %v128
    %v599 = vunpack.c.h.b16 %v128
    %v600 = vunpack.c.l.b16 %v129
    %v601 = vunpack.c.h.b16 %v129
    %v602 = vunpack.c.l.b16 %v130
    %v603 = vunpack.c.h.b16 %v130
    %v604 = vunpack.c.l.b16 %v131
    %v605 = vunpack.c.h.b16 %v131
    %v606 = vunpack.c.l.b16 %v132
    %v607 = vunpack.c.h.b16 %v132
    %v608 = vunpack.c.l.b16 %v133
    %v609 = vunpack.c.h.b16 %v133
    %v610 = vunpack.c.l.b16 %v134
    %v611 = vunpack.c.h.b16 %v134
    %v612 = vunpack.c.l.b16 %v135
    %v613 = vunpack.c.h.b16 %v135
    %v614 = vunpack.c.l.b16 %v136
    %v615 = vunpack.c.h.b16 %v136
    %v616 = vunpack.c.l.b16 %v137
    %v617 = vunpack.c.h.b16 %v137
    %v618 = vunpack.c.l.b16 %v138
    %v619 = vunpack.c.h.b16 %v138
    %v620 = vunpack.c.l.b16 %v139
    %v621 = vunpack.c.h.b16 %v139
    %v622 = vunpack.c.l.b16 %v140
    %v623 = vunpack.c.h.b16 %v140
    %v624 = vunpack.c.l.b16 %v141
    %v625 = vunpack.c.h.b16 %v141
    %v626 = vunpack.c.l.b16 %v142
    %v627 = vunpack.c.h.b16 %v142
    %v628 = vunpack.c.l.b16 %v143
    %v629 = vunpack.c.h.b16 %v143
    %v630 = vunpack.c.l.b16 %v144
    %v631 = vunpack.c.h.b16 %v144
    %v632 = vunpack.c.l.b16 %v145
    %v633 = vunpack.c.h.b16 %v145
    %v634 = vunpack.c.l.b16 %v146
    %v635 = vunpack.c.h.b16 %v146
    %v636 = vunpack.c.l.b16 %v147
    %v637 = vunpack.c.h.b16 %v147
    %v638 = vunpack.c.l.b16 %v148
    %v639 = vunpack.c.h.b16 %v148
    %v640 = vunpack.c.l.b16 %v149
    %v641 = vunpack.c.h.b16 %v149
    %v642 = vunpack.c.l.b16 %v150
    %v643 = vunpack.c.h.b16 %v150
    %v644 = vunpack.c.l.b16 %v151
    %v645 = vunpack.c.h.b16 %v151
    %v646 = vunpack.c.l.b16 %v152
    %v647 = vunpack.c.h.b16 %v152
    %v648 = vunpack.c.l.b16 %v153
    %v649 = vunpack.c.h.b16 %v153
    %v650 = vunpack.c.l.b16 %v154
    %v651 = vunpack.c.h.b16 %v154
    %v652 = vunpack.c.l.b16 %v155
    %v653 = vunpack.c.h.b16 %v155
    %v654 = vunpack.c.l.b16 %v156
    %v655 = vunpack.c.h.b16 %v156
    %v656 = vunpack.c.l.b16 %v157
    %v657 = vunpack.c.h.b16 %v157
    %v658 = vunpack.c.l.b16 %v158
    %v659 = vunpack.c.h.b16 %v158
    %v660 = vunpack.c.l.b16 %v159
    %v661 = vunpack.c.h.b16 %v159
    %v662 = vunpack.c.l.b16 %v160
    %v663 = vunpack.c.h.b16 %v160
    %v664 = vunpack.c.l.b16 %v161
    %v665 = vunpack.c.h.b16 %v161
    %v666 = vunpack.c.l.b16 %v162
    %v667 = vunpack.c.h.b16 %v162
    %v668 = vunpack.c.l.b16 %v163
    %v669 = vunpack.c.h.b16 %v163
    %v670 = vunpack.c.l.b16 %v164
    %v671 = vunpack.c.h.b16 %v164
    %v672 = vunpack.c.l.b16 %v165
    %v673 = vunpack.c.h.b16 %v165
    %v674 = vunpack.c.l.b16 %v166
    %v675 = vunpack.c.h.b16 %v166
    %v676 = vunpack.c.l.b16 %v167
    %v677 = vunpack.c.h.b16 %v167
    %v678 = vunpack.c.l.b16 %v168
    %v679 = vunpack.c.h.b16 %v168
    %v680 = vunpack.c.l.b16 %v169
    %v681 = vunpack.c.h.b16 %v169
    %v682 = vunpack.c.l.b16 %v170
    %v683 = vunpack.c.h.b16 %v170
    %v684 = vunpack.c.l.b16 %v171
    %v685 = vunpack.c.h.b16 %v171
    %v686 = vunpack.c.l.b16 %v172
    %v687 = vunpack.c.h.b16 %v172
    %v688 = vunpack.c.l.b16 %v173
    %v689 = vunpack.c.h.b16 %v173
    %v690 = vunpack.c.l.b16 %v174
    %v691 = vunpack.c.h.b16 %v174
    %v692 = vunpack.c.l.b16 %v175
    %v693 = vunpack.c.h.b16 %v175
    %v694 = vunpack.c.l.b16 %v176
    %v695 = vunpack.c.h.b16 %v176
    %v696 = vunpack.c.l.b16 %v177
    %v697 = vunpack.c.h.b16 %v177
    %v698 = vunpack.c.l.b16 %v178
    %v699 = vunpack.c.h.b16 %v178
    %v700 = vunpack.c.l.b16 %v179
    %v701 = vunpack.c.h.b16 %v179
    %v702 = vunpack.c.l.b16 %v180
    %v703 = vunpack.c.h.b16 %v180
    %v704 = vunpack.c.l.b16 %v181
    %v705 = vunpack.c.h.b16 %v181
    %v706 = vunpack.c.l.b16 %v182
    %v707 = vunpack.c.h.b16 %v182
    %v708 = vunpack.c.l.b16 %v183
    %v709 = vunpack.c.h.b16 %v183
    %v710 = vunpack.c.l.b16 %v184
    %v711 = vunpack.c.h.b16 %v184
    %v712 = vunpack.c.l.b16 %v185
    %v713 = vunpack.c.h.b16 %v185
    %v714 = vunpack.c.l.b16 %v186
    %v715 = vunpack.c.h.b16 %v186
    %v716 = vunpack.c.l.b16 %v187
    %v717 = vunpack.c.h.b16 %v187
    %v718 = vunpack.c.l.b16 %v188
    %v719 = vunpack.c.h.b16 %v188
    %v720 = vunpack.c.l.b16 %v189
    %v721 = vunpack.c.h.b16 %v189
    %v722 = vunpack.c.l.b16 %v190
    %v723 = vunpack.c.h.b16 %v190
    %v724 = vunpack.c.l.b16 %v191
    %v725 = vunpack.c.h.b16 %v191
    %v726 = vunpack.c.l.b16 %v192
    %v727 = vunpack.c.h.b16 %v192
    %v728 = vunpack.c.l.b16 %v193
    %v729 = vunpack.c.h.b16 %v193
    %v730 = vunpack.c.l.b16 %v194
    %v731 = vunpack.c.h.b16 %v194
    %v732 = vunpack.c.l.b16 %v195
    %v733 = vunpack.c.h.b16 %v195
    %v734 = vunpack.c.l.b16 %v196
    %v735 = vunpack.c.h.b16 %v196
    %v736 = vunpack.c.l.b16 %v197
    %v737 = vunpack.c.h.b16 %v197
    %v738 = vunpack.c.l.b16 %v198
    %v739 = vunpack.c.h.b16 %v198
    %v740 = vunpack.c.l.b16 %v199
    %v741 = vunpack.c.h.b16 %v199
    %v742 = vunpack.c.l.b16 %v200
    %v743 = vunpack.c.h.b16 %v200
    %v744 = vunpack.c.l.b16 %v201
    %v745 = vunpack.c.h.b16 %v201
    %v746 = vunpack.c.l.b16 %v202
    %v747 = vunpack.c.h.b16 %v202
    %v748 = vunpack.c.l.b16 %v203
    %v749 = vunpack.c.h.b16 %v203
    %v750 = vunpack.c.l.b16 %v204
    %v751 = vunpack.c.h.b16 %v204
    %v752 = vunpack.c.l.b16 %v205
    %v753 = vunpack.c.h.b16 %v205
    %v754 = vunpack.c.l.b16 %v206
    %v755 = vunpack.c.h.b16 %v206
    %v756 = vunpack.c.l.b16 %v207
    %v757 = vunpack.c.h.b16 %v207
    %v758 = vunpack.c.l.b16 %v208
    %v759 = vunpack.c.h.b16 %v208
    %v760 = vunpack.c.l.b16 %v209
    %v761 = vunpack.c.h.b16 %v209
    %v762 = vunpack.c.l.b16 %v210
    %v763 = vunpack.c.h.b16 %v210
    %v764 = vunpack.c.l.b16 %v211
    %v765 = vunpack.c.h.b16 %v211
    %v766 = vunpack.c.l.b16 %v212
    %v767 = vunpack.c.h.b16 %v212
    %v768 = vunpack.c.l.b16 %v213
    %v769 = vunpack.c.h.b16 %v213
    %v770 = vunpack.c.l.b16 %v214
    %v771 = vunpack.c.h.b16 %v214
    %v772 = vunpack.c.l.b16 %v215
    %v773 = vunpack.c.h.b16 %v215
    %v774 = vunpack.c.l.b16 %v216
    %v775 = vunpack.c.h.b16 %v216
    %v776 = vunpack.c.l.b16 %v217
    %v777 = vunpack.c.h.b16 %v217
    %v778 = vunpack.c.l.b16 %v218
    %v779 = vunpack.c.h.b16 %v218
    %v780 = vunpack.c.l.b16 %v219
    %v781 = vunpack.c.h.b16 %v219
    %v782 = vunpack.c.l.b16 %v220
    %v783 = vunpack.c.h.b16 %v220
    %v784 = vunpack.c.l.b16 %v221
    %v785 = vunpack.c.h.b16 %v221
    %v786 = vunpack.c.l.b16 %v222
    %v787 = vunpack.c.h.b16 %v222
    %v788 = vunpack.c.l.b16 %v223
    %v789 = vunpack.c.h.b16 %v223
    %v790 = vunpack.c.l.b16 %v224
    %v791 = vunpack.c.h.b16 %v224
    %v792 = vunpack.c.l.b16 %v225
    %v793 = vunpack.c.h.b16 %v225
    %v794 = vunpack.c.l.b16 %v226
    %v795 = vunpack.c.h.b16 %v226
    %v796 = vunpack.c.l.b16 %v227
    %v797 = vunpack.c.h.b16 %v227
    %v798 = vunpack.c.l.b16 %v228
    %v799 = vunpack.c.h.b16 %v228
    %v800 = vunpack.c.l.b16 %v229
    %v801 = vunpack.c.h.b16 %v229
    %v802 = vunpack.c.l.b16 %v230
    %v803 = vunpack.c.h.b16 %v230
    %v804 = vunpack.c.l.b16 %v231
    %v805 = vunpack.c.h.b16 %v231
    %v806 = vunpack.c.l.b16 %v232
    %v807 = vunpack.c.h.b16 %v232
    %v808 = vunpack.c.l.b16 %v233
    %v809 = vunpack.c.h.b16 %v233
    %v810 = vunpack.c.l.b16 %v234
    %v811 = vunpack.c.h.b16 %v234
    %v812 = vunpack.c.l.b16 %v235
    %v813 = vunpack.c.h.b16 %v235
    %v814 = vunpack.c.l.b16 %v236
    %v815 = vunpack.c.h.b16 %v236
    %v816 = vunpack.c.l.b16 %v237
    %v817 = vunpack.c.h.b16 %v237
    %v818 = vunpack.c.l.b16 %v238
    %v819 = vunpack.c.h.b16 %v238
    %v820 = vunpack.c.l.b16 %v239
    %v821 = vunpack.c.h.b16 %v239
    %v822 = vunpack.c.l.b16 %v240
    %v823 = vunpack.c.h.b16 %v240
    %v824 = vunpack.c.l.b16 %v241
    %v825 = vunpack.c.h.b16 %v241
    %v826 = vunpack.c.l.b16 %v242
    %v827 = vunpack.c.h.b16 %v242
    %v828 = vunpack.c.l.b16 %v243
    %v829 = vunpack.c.h.b16 %v243
    %v830 = vunpack.c.l.b16 %v244
    %v831 = vunpack.c.h.b16 %v244
    %v832 = vunpack.c.l.b16 %v245
    %v833 = vunpack.c.h.b16 %v245
    %v834 = vunpack.c.l.b16 %v246
    %v835 = vunpack.c.h.b16 %v246
    %v836 = vunpack.c.l.b16 %v247
    %v837 = vunpack.c.h.b16 %v247
    %v838 = vunpack.c.l.b16 %v248
    %v839 = vunpack.c.h.b16 %v248
    %v840 = vunpack.c.l.b16 %v249
    %v841 = vunpack.c.h.b16 %v249
    %v842 = vunpack.c.l.b16 %v250
    %v843 = vunpack.c.h.b16 %v250
    %v844 = vunpack.c.l.b16 %v251
    %v845 = vunpack.c.h.b16 %v251
    %v846 = vunpack.c.l.b16 %v252
    %v847 = vunpack.c.h.b16 %v252
    %v848 = vunpack.c.l.b16 %v253
    %v849 = vunpack.c.h.b16 %v253
    %v850 = vunpack.c.l.b16 %v254
    %v851 = vunpack.c.h.b16 %v254
    %v852 = vunpack.c.l.b16 %v255
    %v853 = vunpack.c.h.b16 %v255
    %v854 = vpack.c.b16 %v474, %v470
    %v855 = vpack.c.b16 %v475, %v471
    %v856 = vpack.c.b16 %v476, %v472
    %v857 = vpack.c.b16 %v477, %v473
    %v858 = vpack.c.b16 %v482, %v478
    %v859 = vpack.c.b16 %v483, %v479
    %v860 = vpack.c.b16 %v484, %v480
    %v861 = vpack.c.b16 %v485, %v481
    %v862 = vpack.c.b16 %v490, %v486
    %v863 = vpack.c.b16 %v491, %v487
    %v864 = vpack.c.b16 %v492, %v488
    %v865 = vpack.c.b16 %v493, %v489
    %v866 = vpack.c.b16 %v498, %v494
    %v867 = vpack.c.b16 %v499, %v495
    %v868 = vpack.c.b16 %v500, %v496
    %v869 = vpack.c.b16 %v501, %v497
    %v870 = vpack.c.b16 %v506, %v502
    %v871 = vpack.c.b16 %v507, %v503
    %v872 = vpack.c.b16 %v508, %v504
    %v873 = vpack.c.b16 %v509, %v505
    %v874 = vpack.c.b16 %v514, %v510
    %v875 = vpack.c.b16 %v515, %v511
    %v876 = vpack.c.b16 %v516, %v512
    %v877 = vpack.c.b16 %v517, %v513
    %v878 = vpack.c.b16 %v522, %v518
    %v879 = vpack.c.b16 %v523, %v519
    %v880 = vpack.c.b16 %v524, %v520
    %v881 = vpack.c.b16 %v525, %v521
    %v882 = vpack.c.b16 %v530, %v526
    %v883 = vpack.c.b16 %v531, %v527
    %v884 = vpack.c.b16 %v532, %v528
    %v885 = vpack.c.b16 %v533, %v529
    %v886 = vpack.c.b16 %v538, %v534
    %v887 = vpack.c.b16 %v539, %v535
    %v888 = vpack.c.b16 %v540, %v536
    %v889 = vpack.c.b16 %v541, %v537
    %v890 = vpack.c.b16 %v546, %v542
    %v891 = vpack.c.b16 %v547, %v543
    %v892 = vpack.c.b16 %v548, %v544
    %v893 = vpack.c.b16 %v549, %v545
    %v894 = vpack.c.b16 %v554, %v550
    %v895 = vpack.c.b16 %v555, %v551
    %v896 = vpack.c.b16 %v556, %v552
    %v897 = vpack.c.b16 %v557, %v553
    %v898 = vpack.c.b16 %v562, %v558
    %v899 = vpack.c.b16 %v563, %v559
    %v900 = vpack.c.b16 %v564, %v560
    %v901 = vpack.c.b16 %v565, %v561
    %v902 = vpack.c.b16 %v570, %v566
    %v903 = vpack.c.b16 %v571, %v567
    %v904 = vpack.c.b16 %v572, %v568
    %v905 = vpack.c.b16 %v573, %v569
    %v906 = vpack.c.b16 %v578, %v574
    %v907 = vpack.c.b16 %v579, %v575
    %v908 = vpack.c.b16 %v580, %v576
    %v909 = vpack.c.b16 %v581, %v577
    %v910 = vpack.c.b16 %v586, %v582
    %v911 = vpack.c.b16 %v587, %v583
    %v912 = vpack.c.b16 %v588, %v584
    %v913 = vpack.c.b16 %v589, %v585
    %v914 = vpack.c.b16 %v594, %v590
    %v915 = vpack.c.b16 %v595, %v591
    %v916 = vpack.c.b16 %v596, %v592
    %v917 = vpack.c.b16 %v597, %v593
    %v918 = vpack.c.b16 %v602, %v598
    %v919 = vpack.c.b16 %v603, %v599
    %v920 = vpack.c.b16 %v604, %v600
    %v921 = vpack.c.b16 %v605, %v601
    %v922 = vpack.c.b16 %v610, %v606
    %v923 = vpack.c.b16 %v611, %v607
    %v924 = vpack.c.b16 %v612, %v608
    %v925 = vpack.c.b16 %v613, %v609
    %v926 = vpack.c.b16 %v618, %v614
    %v927 = vpack.c.b16 %v619, %v615
    %v928 = vpack.c.b16 %v620, %v616
    %v929 = vpack.c.b16 %v621, %v617
    %v930 = vpack.c.b16 %v626, %v622
    %v931 = vpack.c.b16 %v627, %v623
    %v932 = vpack.c.b16 %v628, %v624
    %v933 = vpack.c.b16 %v629, %v625
    %v934 = vpack.c.b16 %v634, %v630
    %v935 = vpack.c.b16 %v635, %v631
    %v936 = vpack.c.b16 %v636, %v632
    %v937 = vpack.c.b16 %v637, %v633
    %v938 = vpack.c.b16 %v642, %v638
    %v939 = vpack.c.b16 %v643, %v639
    %v940 = vpack.c.b16 %v644, %v640
    %v941 = vpack.c.b16 %v645, %v641
    %v942 = vpack.c.b16 %v650, %v646
    %v943 = vpack.c.b16 %v651, %v647
    %v944 = vpack.c.b16 %v652, %v648
    %v945 = vpack.c.b16 %v653, %v649
    %v946 = vpack.c.b16 %v658, %v654
    %v947 = vpack.c.b16 %v659, %v655
    %v948 = vpack.c.b16 %v660, %v656
    %v949 = vpack.c.b16 %v661, %v657
    %v950 = vpack.c.b16 %v666, %v662
    %v951 = vpack.c.b16 %v667, %v663
    %v952 = vpack.c.b16 %v668, %v664
    %v953 = vpack.c.b16 %v669, %v665
    %v954 = vpack.c.b16 %v674, %v670
    %v955 = vpack.c.b16 %v675, %v671
    %v956 = vpack.c.b16 %v676, %v672
    %v957 = vpack.c.b16 %v677, %v673
    %v958 = vpack.c.b16 %v682, %v678
    %v959 = vpack.c.b16 %v683, %v679
    %v960 = vpack.c.b16 %v684, %v680
    %v961 = vpack.c.b16 %v685, %v681
    %v962 = vpack.c.b16 %v690, %v686
    %v963 = vpack.c.b16 %v691, %v687
    %v964 = vpack.c.b16 %v692, %v688
    %v965 = vpack.c.b16 %v693, %v689
    %v966 = vpack.c.b16 %v698, %v694
    %v967 = vpack.c.b16 %v699, %v695
    %v968 = vpack.c.b16 %v700, %v696
    %v969 = vpack.c.b16 %v701, %v697
    %v970 = vpack.c.b16 %v706, %v702
    %v971 = vpack.c.b16 %v707, %v703
    %v972 = vpack.c.b16 %v708, %v704
    %v973 = vpack.c.b16 %v709, %v705
    %v974 = vpack.c.b16 %v714, %v710
    %v975 = vpack.c.b16 %v715, %v711
    %v976 = vpack.c.b16 %v716, %v712
    %v977 = vpack.c.b16 %v717, %v713
    %v978 = vpack.c.b16 %v722, %v718
    %v979 = vpack.c.b16 %v723, %v719
    %v980 = vpack.c.b16 %v724, %v720
    %v981 = vpack.c.b16 %v725, %v721
    %v982 = vpack.c.b16 %v730, %v726
    %v983 = vpack.c.b16 %v731, %v727
    %v984 = vpack.c.b16 %v732, %v728
    %v985 = vpack.c.b16 %v733, %v729
    %v986 = vpack.c.b16 %v738, %v734
    %v987 = vpack.c.b16 %v739, %v735
    %v988 = vpack.c.b16 %v740, %v736
    %v989 = vpack.c.b16 %v741, %v737
    %v990 = vpack.c.b16 %v746, %v742
    %v991 = vpack.c.b16 %v747, %v743
    %v992 = vpack.c.b16 %v748, %v744
    %v993 = vpack.c.b16 %v749, %v745
    %v994 = vpack.c.b16 %v754, %v750
    %v995 = vpack.c.b16 %v755, %v751
    %v996 = vpack.c.b16 %v756, %v752
    %v997 = vpack.c.b16 %v757, %v753
    %v998 = vpack.c.b16 %v762, %v758
    %v999 = vpack.c.b16 %v763, %v759
    %v1000 = vpack.c.b16 %v764, %v760
    %v1001 = vpack.c.b16 %v765, %v761
    %v1002 = vpack.c.b16 %v770, %v766
    %v1003 = vpack.c.b16 %v771, %v767
    %v1004 = vpack.c.b16 %v772, %v768
    %v1005 = vpack.c.b16 %v773, %v769
    %v1006 = vpack.c.b16 %v778, %v774
    %v1007 = vpack.c.b16 %v779, %v775
    %v1008 = vpack.c.b16 %v780, %v776
    %v1009 = vpack.c.b16 %v781, %v777
    %v1010 = vpack.c.b16 %v786, %v782
    %v1011 = vpack.c.b16 %v787, %v783
    %v1012 = vpack.c.b16 %v788, %v784
    %v1013 = vpack.c.b16 %v789, %v785
    %v1014 = vpack.c.b16 %v794, %v790
    %v1015 = vpack.c.b16 %v795, %v791
    %v1016 = vpack.c.b16 %v796, %v792
    %v1017 = vpack.c.b16 %v797, %v793
    %v1018 = vpack.c.b16 %v802, %v798
    %v1019 = vpack.c.b16 %v803, %v799
    %v1020 = vpack.c.b16 %v804, %v800
    %v1021 = vpack.c.b16 %v805, %v801
    %v1022 = vpack.c.b16 %v810, %v806
    %v1023 = vpack.c.b16 %v811, %v807
    %v1024 = vpack.c.b16 %v812, %v808
    %v1025 = vpack.c.b16 %v813, %v809
    %v1026 = vpack.c.b16 %v818, %v814
    %v1027 = vpack.c.b16 %v819, %v815
    %v1028 = vpack.c.b16 %v820, %v816
    %v1029 = vpack.c.b16 %v821, %v817
    %v1030 = vpack.c.b16 %v826, %v822
    %v1031 = vpack.c.b16 %v827, %v823
    %v1032 = vpack.c.b16 %v828, %v824
    %v1033 = vpack.c.b16 %v829, %v825
    %v1034 = vpack.c.b16 %v834, %v830
    %v1035 = vpack.c.b16 %v835, %v831
    %v1036 = vpack.c.b16 %v836, %v832
    %v1037 = vpack.c.b16 %v837, %v833
    %v1038 = vpack.c.b16 %v842, %v838
    %v1039 = vpack.c.b16 %v843, %v839
    %v1040 = vpack.c.b16 %v844, %v840
    %v1041 = vpack.c.b16 %v845, %v841
    %v1042 = vpack.c.b16 %v850, %v846
    %v1043 = vpack.c.b16 %v851, %v847
    %v1044 = vpack.c.b16 %v852, %v848
    %v1045 = vpack.c.b16 %v853, %v849
    %1238 = vmatprep.subr.bf16.mxu0 %v883
    %1239 = vmatpush1.bf16.msra.mxu0 %v882
    %1240 = vmatprep.subr.bf16.mxu0 %v879
    %1241 = vmatpush1.bf16.msra.mxu0 %v878
    %1242 = vmatprep.subr.bf16.mxu0 %v875
    %1243 = vmatpush1.bf16.msra.mxu0 %v874
    %1244 = vmatprep.subr.bf16.mxu0 %v871
    %1245 = vmatpush1.bf16.msra.mxu0 %v870
    %1246 = vmatprep.subr.bf16.mxu0 %v867
    %1247 = vmatpush1.bf16.msra.mxu0 %v866
    %1248 = vmatprep.subr.bf16.mxu0 %v863
    %1249 = vmatpush1.bf16.msra.mxu0 %v862
    %1250 = vmatprep.subr.bf16.mxu0 %v859
    %1251 = vmatpush1.bf16.msra.mxu0 %v858
    %1252 = vmatprep.subr.bf16.mxu0 %v855
    %1253 = vmatpush1.bf16.msra.mxu0 %v854
    %1254 = vmatprep.subr.bf16.mxu0 %v915
    %1255 = vmatpush2.bf16.msra.mxu0 %v914
    %1256 = vmatprep.subr.bf16.mxu0 %v911
    %1257 = vmatpush2.bf16.msra.mxu0 %v910
    %1258 = vmatprep.subr.bf16.mxu0 %v907
    %1259 = vmatpush2.bf16.msra.mxu0 %v906
    %1260 = vmatprep.subr.bf16.mxu0 %v903
    %1261 = vmatpush2.bf16.msra.mxu0 %v902
    %1262 = vmatprep.subr.bf16.mxu0 %v899
    %1263 = vmatpush2.bf16.msra.mxu0 %v898
    %1264 = vmatprep.subr.bf16.mxu0 %v895
    %1265 = vmatpush2.bf16.msra.mxu0 %v894
    %1266 = vmatprep.subr.bf16.mxu0 %v891
    %1267 = vmatpush2.bf16.msra.mxu0 %v890
    %1268 = vmatprep.subr.bf16.mxu0 %v887
    %1269 = vmatpush2.bf16.msra.mxu0 %v886
    %1270 = vmatprep.mubr.bf16.mxu0 %v59
    %1271 = vmatmul.mubr.bf16.gmra.mxu0 %v58
    %v1272 = vpop.f32.mrf.mxu0
    %v1273 = vadd.f32 %v261, %v1272
    %v1274 = vpop.f32.mrf.mxu0
    %v1275 = vadd.f32 %v265, %v1274
    %v1276 = vpop.f32.mrf.mxu0
    %v1277 = vpop.f32.mrf.mxu0
    %1278 = vdwg.mxu0
    %1279 = vmatprep.subr.bf16.mxu0 %v947
    %1280 = vmatpush1.bf16.msra.mxu0 %v946
    %1281 = vmatprep.subr.bf16.mxu0 %v943
    %1282 = vmatpush1.bf16.msra.mxu0 %v942
    %1283 = vmatprep.subr.bf16.mxu0 %v939
    %1284 = vmatpush1.bf16.msra.mxu0 %v938
    %1285 = vmatprep.subr.bf16.mxu0 %v935
    %1286 = vmatpush1.bf16.msra.mxu0 %v934
    %1287 = vmatprep.subr.bf16.mxu0 %v931
    %1288 = vmatpush1.bf16.msra.mxu0 %v930
    %1289 = vmatprep.subr.bf16.mxu0 %v927
    %1290 = vmatpush1.bf16.msra.mxu0 %v926
    %1291 = vmatprep.subr.bf16.mxu0 %v923
    %1292 = vmatpush1.bf16.msra.mxu0 %v922
    %1293 = vmatprep.subr.bf16.mxu0 %v919
    %1294 = vmatpush1.bf16.msra.mxu0 %v918
    %1295 = vmatprep.subr.bf16.mxu0 %v979
    %1296 = vmatpush2.bf16.msra.mxu0 %v978
    %1297 = vmatprep.subr.bf16.mxu0 %v975
    %1298 = vmatpush2.bf16.msra.mxu0 %v974
    %1299 = vmatprep.subr.bf16.mxu0 %v971
    %1300 = vmatpush2.bf16.msra.mxu0 %v970
    %1301 = vmatprep.subr.bf16.mxu0 %v967
    %1302 = vmatpush2.bf16.msra.mxu0 %v966
    %1303 = vmatprep.subr.bf16.mxu0 %v963
    %1304 = vmatpush2.bf16.msra.mxu0 %v962
    %1305 = vmatprep.subr.bf16.mxu0 %v959
    %1306 = vmatpush2.bf16.msra.mxu0 %v958
    %1307 = vmatprep.subr.bf16.mxu0 %v955
    %1308 = vmatpush2.bf16.msra.mxu0 %v954
    %1309 = vmatprep.subr.bf16.mxu0 %v951
    %1310 = vmatpush2.bf16.msra.mxu0 %v950
    %1311 = vmatprep.mubr.bf16.mxu0 %v61
    %1312 = vmatmul.mubr.bf16.gmra.mxu0 %v60
    %v1313 = vpop.f32.mrf.mxu0
    %v1314 = vadd.f32 %v1273, %v1313
    %v1315 = vpop.f32.mrf.mxu0
    %v1316 = vadd.f32 %v1275, %v1315
    %v1317 = vpop.f32.mrf.mxu0
    %v1318 = vpop.f32.mrf.mxu0
    %1319 = vdwg.mxu0
    %1320 = vmatprep.subr.bf16.mxu0 %v1011
    %1321 = vmatpush1.bf16.msra.mxu0 %v1010
    %1322 = vmatprep.subr.bf16.mxu0 %v1007
    %1323 = vmatpush1.bf16.msra.mxu0 %v1006
    %1324 = vmatprep.subr.bf16.mxu0 %v1003
    %1325 = vmatpush1.bf16.msra.mxu0 %v1002
    %1326 = vmatprep.subr.bf16.mxu0 %v999
    %1327 = vmatpush1.bf16.msra.mxu0 %v998
    %1328 = vmatprep.subr.bf16.mxu0 %v995
    %1329 = vmatpush1.bf16.msra.mxu0 %v994
    %1330 = vmatprep.subr.bf16.mxu0 %v991
    %1331 = vmatpush1.bf16.msra.mxu0 %v990
    %1332 = vmatprep.subr.bf16.mxu0 %v987
    %1333 = vmatpush1.bf16.msra.mxu0 %v986
    %1334 = vmatprep.subr.bf16.mxu0 %v983
    %1335 = vmatpush1.bf16.msra.mxu0 %v982
    %1336 = vmatprep.subr.bf16.mxu0 %v1043
    %1337 = vmatpush2.bf16.msra.mxu0 %v1042
    %1338 = vmatprep.subr.bf16.mxu0 %v1039
    %1339 = vmatpush2.bf16.msra.mxu0 %v1038
    %1340 = vmatprep.subr.bf16.mxu0 %v1035
    %1341 = vmatpush2.bf16.msra.mxu0 %v1034
    %1342 = vmatprep.subr.bf16.mxu0 %v1031
    %1343 = vmatpush2.bf16.msra.mxu0 %v1030
    %1344 = vmatprep.subr.bf16.mxu0 %v1027
    %1345 = vmatpush2.bf16.msra.mxu0 %v1026
    %1346 = vmatprep.subr.bf16.mxu0 %v1023
    %1347 = vmatpush2.bf16.msra.mxu0 %v1022
    %1348 = vmatprep.subr.bf16.mxu0 %v1019
    %1349 = vmatpush2.bf16.msra.mxu0 %v1018
    %1350 = vmatprep.subr.bf16.mxu0 %v1015
    %1351 = vmatpush2.bf16.msra.mxu0 %v1014
    %1352 = vmatprep.mubr.bf16.mxu0 %v63
    %1353 = vmatmul.mubr.bf16.gmra.mxu0 %v62
    %v1354 = vpop.f32.mrf.mxu0
    %v1355 = vadd.f32 %v1314, %v1354
    %v1356 = vpop.f32.mrf.mxu0
    %v1357 = vadd.f32 %v1316, %v1356
    %v1358 = vpop.f32.mrf.mxu0
    %v1359 = vpop.f32.mrf.mxu0
    %1360 = vdwg.mxu0
    %1361 = vmatprep.subr.bf16.mxu0 %v885
    %1362 = vmatpush1.bf16.msra.mxu0 %v884
    %1363 = vmatprep.subr.bf16.mxu0 %v881
    %1364 = vmatpush1.bf16.msra.mxu0 %v880
    %1365 = vmatprep.subr.bf16.mxu0 %v877
    %1366 = vmatpush1.bf16.msra.mxu0 %v876
    %1367 = vmatprep.subr.bf16.mxu0 %v873
    %1368 = vmatpush1.bf16.msra.mxu0 %v872
    %1369 = vmatprep.subr.bf16.mxu0 %v869
    %1370 = vmatpush1.bf16.msra.mxu0 %v868
    %1371 = vmatprep.subr.bf16.mxu0 %v865
    %1372 = vmatpush1.bf16.msra.mxu0 %v864
    %1373 = vmatprep.subr.bf16.mxu0 %v861
    %1374 = vmatpush1.bf16.msra.mxu0 %v860
    %1375 = vmatprep.subr.bf16.mxu0 %v857
    %1376 = vmatpush1.bf16.msra.mxu0 %v856
    %1377 = vmatprep.subr.bf16.mxu0 %v917
    %1378 = vmatpush2.bf16.msra.mxu0 %v916
    %1379 = vmatprep.subr.bf16.mxu0 %v913
    %1380 = vmatpush2.bf16.msra.mxu0 %v912
    %1381 = vmatprep.subr.bf16.mxu0 %v909
    %1382 = vmatpush2.bf16.msra.mxu0 %v908
    %1383 = vmatprep.subr.bf16.mxu0 %v905
    %1384 = vmatpush2.bf16.msra.mxu0 %v904
    %1385 = vmatprep.subr.bf16.mxu0 %v901
    %1386 = vmatpush2.bf16.msra.mxu0 %v900
    %1387 = vmatprep.subr.bf16.mxu0 %v897
    %1388 = vmatpush2.bf16.msra.mxu0 %v896
    %1389 = vmatprep.subr.bf16.mxu0 %v893
    %1390 = vmatpush2.bf16.msra.mxu0 %v892
    %1391 = vmatprep.subr.bf16.mxu0 %v889
    %1392 = vmatpush2.bf16.msra.mxu0 %v888
    %1393 = vmatprep.mubr.bf16.mxu0 %v59
    %1394 = vmatmul.mubr.bf16.gmra.mxu0 %v58
    %v1395 = vpop.f32.mrf.mxu0
    %v1396 = vadd.f32 %v269, %v1395
    %v1397 = vpop.f32.mrf.mxu0
    %v1398 = vadd.f32 %v273, %v1397
    %v1399 = vpop.f32.mrf.mxu0
    %v1400 = vpop.f32.mrf.mxu0
    %1401 = vdwg.mxu0
    %1402 = vmatprep.subr.bf16.mxu0 %v949
    %1403 = vmatpush1.bf16.msra.mxu0 %v948
    %1404 = vmatprep.subr.bf16.mxu0 %v945
    %1405 = vmatpush1.bf16.msra.mxu0 %v944
    %1406 = vmatprep.subr.bf16.mxu0 %v941
    %1407 = vmatpush1.bf16.msra.mxu0 %v940
    %1408 = vmatprep.subr.bf16.mxu0 %v937
    %1409 = vmatpush1.bf16.msra.mxu0 %v936
    %1410 = vmatprep.subr.bf16.mxu0 %v933
    %1411 = vmatpush1.bf16.msra.mxu0 %v932
    %1412 = vmatprep.subr.bf16.mxu0 %v929
    %1413 = vmatpush1.bf16.msra.mxu0 %v928
    %1414 = vmatprep.subr.bf16.mxu0 %v925
    %1415 = vmatpush1.bf16.msra.mxu0 %v924
    %1416 = vmatprep.subr.bf16.mxu0 %v921
    %1417 = vmatpush1.bf16.msra.mxu0 %v920
    %1418 = vmatprep.subr.bf16.mxu0 %v981
    %1419 = vmatpush2.bf16.msra.mxu0 %v980
    %1420 = vmatprep.subr.bf16.mxu0 %v977
    %1421 = vmatpush2.bf16.msra.mxu0 %v976
    %1422 = vmatprep.subr.bf16.mxu0 %v973
    %1423 = vmatpush2.bf16.msra.mxu0 %v972
    %1424 = vmatprep.subr.bf16.mxu0 %v969
    %1425 = vmatpush2.bf16.msra.mxu0 %v968
    %1426 = vmatprep.subr.bf16.mxu0 %v965
    %1427 = vmatpush2.bf16.msra.mxu0 %v964
    %1428 = vmatprep.subr.bf16.mxu0 %v961
    %1429 = vmatpush2.bf16.msra.mxu0 %v960
    %1430 = vmatprep.subr.bf16.mxu0 %v957
    %1431 = vmatpush2.bf16.msra.mxu0 %v956
    %1432 = vmatprep.subr.bf16.mxu0 %v953
    %1433 = vmatpush2.bf16.msra.mxu0 %v952
    %1434 = vmatprep.mubr.bf16.mxu0 %v61
    %1435 = vmatmul.mubr.bf16.gmra.mxu0 %v60
    %v1436 = vpop.f32.mrf.mxu0
    %v1437 = vadd.f32 %v1396, %v1436
    %v1438 = vpop.f32.mrf.mxu0
    %v1439 = vadd.f32 %v1398, %v1438
    %v1440 = vpop.f32.mrf.mxu0
    %v1441 = vpop.f32.mrf.mxu0
    %1442 = vdwg.mxu0
    %1443 = vmatprep.subr.bf16.mxu0 %v1013
    %1444 = vmatpush1.bf16.msra.mxu0 %v1012
    %1445 = vmatprep.subr.bf16.mxu0 %v1009
    %1446 = vmatpush1.bf16.msra.mxu0 %v1008
    %1447 = vmatprep.subr.bf16.mxu0 %v1005
    %1448 = vmatpush1.bf16.msra.mxu0 %v1004
    %1449 = vmatprep.subr.bf16.mxu0 %v1001
    %1450 = vmatpush1.bf16.msra.mxu0 %v1000
    %1451 = vmatprep.subr.bf16.mxu0 %v997
    %1452 = vmatpush1.bf16.msra.mxu0 %v996
    %1453 = vmatprep.subr.bf16.mxu0 %v993
    %1454 = vmatpush1.bf16.msra.mxu0 %v992
    %1455 = vmatprep.subr.bf16.mxu0 %v989
    %1456 = vmatpush1.bf16.msra.mxu0 %v988
    %1457 = vmatprep.subr.bf16.mxu0 %v985
    %1458 = vmatpush1.bf16.msra.mxu0 %v984
    %1459 = vmatprep.subr.bf16.mxu0 %v1045
    %1460 = vmatpush2.bf16.msra.mxu0 %v1044
    %1461 = vmatprep.subr.bf16.mxu0 %v1041
    %1462 = vmatpush2.bf16.msra.mxu0 %v1040
    %1463 = vmatprep.subr.bf16.mxu0 %v1037
    %1464 = vmatpush2.bf16.msra.mxu0 %v1036
    %1465 = vmatprep.subr.bf16.mxu0 %v1033
    %1466 = vmatpush2.bf16.msra.mxu0 %v1032
    %1467 = vmatprep.subr.bf16.mxu0 %v1029
    %1468 = vmatpush2.bf16.msra.mxu0 %v1028
    %1469 = vmatprep.subr.bf16.mxu0 %v1025
    %1470 = vmatpush2.bf16.msra.mxu0 %v1024
    %1471 = vmatprep.subr.bf16.mxu0 %v1021
    %1472 = vmatpush2.bf16.msra.mxu0 %v1020
    %1473 = vmatprep.subr.bf16.mxu0 %v1017
    %1474 = vmatpush2.bf16.msra.mxu0 %v1016
    %1475 = vmatprep.mubr.bf16.mxu0 %v63
    %1476 = vmatmul.mubr.bf16.gmra.mxu0 %v62
    %v1477 = vpop.f32.mrf.mxu0
    %v1478 = vadd.f32 %v1437, %v1477
    %v1479 = vpop.f32.mrf.mxu0
    %v1480 = vadd.f32 %v1439, %v1479
    %v1481 = vpop.f32.mrf.mxu0
    %v1482 = vpop.f32.mrf.mxu0
    %1483 = vdwg.mxu0
    %v1484 = vmax.f32 %v1355, 0.0
    %v1485 = vmax.f32 %v1357, 0.0
    %v1486 = vmax.f32 %v1478, 0.0
    %v1487 = vmax.f32 %v1480, 0.0
    %v1488 = vpack.c.bf16 %v1484, %v1484
    %v1489 = vpack.c.bf16 %v1485, %v1485
    %v1490 = vpack.c.bf16 %v1486, %v1486
    %v1491 = vpack.c.bf16 %v1487, %v1487
    %v1492 = vld [vmem:[%s3] sm:$0xff]
    %v1493 = vld [vmem:[%s3 + $0x8] sm:$0xff]
    %v1494 = vld [vmem:[%s3 + $0x10] sm:$0xff]
    %v1495 = vld [vmem:[%s3 + $0x18] sm:$0xff]
    %v1496 = vld [vmem:[%s3 + $0x20] sm:$0xff]
    %v1497 = vld [vmem:[%s3 + $0x28] sm:$0xff]
    %v1498 = vld [vmem:[%s3 + $0x30] sm:$0xff]
    %v1499 = vld [vmem:[%s3 + $0x38] sm:$0xff]
    %v1500 = vld [vmem:[%s3 + $0x40] sm:$0xff]
    %v1501 = vld [vmem:[%s3 + $0x48] sm:$0xff]
    %v1502 = vld [vmem:[%s3 + $0x50] sm:$0xff]
    %v1503 = vld [vmem:[%s3 + $0x58] sm:$0xff]
    %v1504 = vld [vmem:[%s3 + $0x60] sm:$0xff]
    %v1505 = vld [vmem:[%s3 + $0x68] sm:$0xff]
    %v1506 = vld [vmem:[%s3 + $0x70] sm:$0xff]
    %v1507 = vld [vmem:[%s3 + $0x78] sm:$0xff]
    %v1508 = vld [vmem:[%s3 + $0x80] sm:$0xff]
    %v1509 = vld [vmem:[%s3 + $0x88] sm:$0xff]
    %v1510 = vld [vmem:[%s3 + $0x90] sm:$0xff]
    %v1511 = vld [vmem:[%s3 + $0x98] sm:$0xff]
    %v1512 = vld [vmem:[%s3 + $0xa0] sm:$0xff]
    %v1513 = vld [vmem:[%s3 + $0xa8] sm:$0xff]
    %v1514 = vld [vmem:[%s3 + $0xb0] sm:$0xff]
    %v1515 = vld [vmem:[%s3 + $0xb8] sm:$0xff]
    %v1516 = vld [vmem:[%s3 + $0xc0] sm:$0xff]
    %v1517 = vld [vmem:[%s3 + $0xc8] sm:$0xff]
    %v1518 = vld [vmem:[%s3 + $0xd0] sm:$0xff]
    %v1519 = vld [vmem:[%s3 + $0xd8] sm:$0xff]
    %v1520 = vld [vmem:[%s3 + $0xe0] sm:$0xff]
    %v1521 = vld [vmem:[%s3 + $0xe8] sm:$0xff]
    %v1522 = vld [vmem:[%s3 + $0xf0] sm:$0xff]
    %v1523 = vld [vmem:[%s3 + $0xf8] sm:$0xff]
    %v1524 = vld [vmem:[%s3 + $0x100] sm:$0xff]
    %v1525 = vld [vmem:[%s3 + $0x108] sm:$0xff]
    %v1526 = vld [vmem:[%s3 + $0x110] sm:$0xff]
    %v1527 = vld [vmem:[%s3 + $0x118] sm:$0xff]
    %v1528 = vld [vmem:[%s3 + $0x120] sm:$0xff]
    %v1529 = vld [vmem:[%s3 + $0x128] sm:$0xff]
    %v1530 = vld [vmem:[%s3 + $0x130] sm:$0xff]
    %v1531 = vld [vmem:[%s3 + $0x138] sm:$0xff]
    %v1532 = vld [vmem:[%s3 + $0x140] sm:$0xff]
    %v1533 = vld [vmem:[%s3 + $0x148] sm:$0xff]
    %v1534 = vld [vmem:[%s3 + $0x150] sm:$0xff]
    %v1535 = vld [vmem:[%s3 + $0x158] sm:$0xff]
    %v1536 = vld [vmem:[%s3 + $0x160] sm:$0xff]
    %v1537 = vld [vmem:[%s3 + $0x168] sm:$0xff]
    %v1538 = vld [vmem:[%s3 + $0x170] sm:$0xff]
    %v1539 = vld [vmem:[%s3 + $0x178] sm:$0xff]
    %v1540 = vld [vmem:[%s3 + $0x180] sm:$0xff]
    %v1541 = vld [vmem:[%s3 + $0x188] sm:$0xff]
    %v1542 = vld [vmem:[%s3 + $0x190] sm:$0xff]
    %v1543 = vld [vmem:[%s3 + $0x198] sm:$0xff]
    %v1544 = vld [vmem:[%s3 + $0x1a0] sm:$0xff]
    %v1545 = vld [vmem:[%s3 + $0x1a8] sm:$0xff]
    %v1546 = vld [vmem:[%s3 + $0x1b0] sm:$0xff]
    %v1547 = vld [vmem:[%s3 + $0x1b8] sm:$0xff]
    %v1548 = vld [vmem:[%s3 + $0x1c0] sm:$0xff]
    %v1549 = vld [vmem:[%s3 + $0x1c8] sm:$0xff]
    %v1550 = vld [vmem:[%s3 + $0x1d0] sm:$0xff]
    %v1551 = vld [vmem:[%s3 + $0x1d8] sm:$0xff]
    %v1552 = vld [vmem:[%s3 + $0x1e0] sm:$0xff]
    %v1553 = vld [vmem:[%s3 + $0x1e8] sm:$0xff]
    %v1554 = vld [vmem:[%s3 + $0x1f0] sm:$0xff]
    %v1555 = vld [vmem:[%s3 + $0x1f8] sm:$0xff]
    %v1556 = vld [vmem:[%s3 + $0x200] sm:$0xff]
    %v1557 = vld [vmem:[%s3 + $0x208] sm:$0xff]
    %v1558 = vld [vmem:[%s3 + $0x210] sm:$0xff]
    %v1559 = vld [vmem:[%s3 + $0x218] sm:$0xff]
    %v1560 = vld [vmem:[%s3 + $0x220] sm:$0xff]
    %v1561 = vld [vmem:[%s3 + $0x228] sm:$0xff]
    %v1562 = vld [vmem:[%s3 + $0x230] sm:$0xff]
    %v1563 = vld [vmem:[%s3 + $0x238] sm:$0xff]
    %v1564 = vld [vmem:[%s3 + $0x240] sm:$0xff]
    %v1565 = vld [vmem:[%s3 + $0x248] sm:$0xff]
    %v1566 = vld [vmem:[%s3 + $0x250] sm:$0xff]
    %v1567 = vld [vmem:[%s3 + $0x258] sm:$0xff]
    %v1568 = vld [vmem:[%s3 + $0x260] sm:$0xff]
    %v1569 = vld [vmem:[%s3 + $0x268] sm:$0xff]
    %v1570 = vld [vmem:[%s3 + $0x270] sm:$0xff]
    %v1571 = vld [vmem:[%s3 + $0x278] sm:$0xff]
    %v1572 = vld [vmem:[%s3 + $0x280] sm:$0xff]
    %v1573 = vld [vmem:[%s3 + $0x288] sm:$0xff]
    %v1574 = vld [vmem:[%s3 + $0x290] sm:$0xff]
    %v1575 = vld [vmem:[%s3 + $0x298] sm:$0xff]
    %v1576 = vld [vmem:[%s3 + $0x2a0] sm:$0xff]
    %v1577 = vld [vmem:[%s3 + $0x2a8] sm:$0xff]
    %v1578 = vld [vmem:[%s3 + $0x2b0] sm:$0xff]
    %v1579 = vld [vmem:[%s3 + $0x2b8] sm:$0xff]
    %v1580 = vld [vmem:[%s3 + $0x2c0] sm:$0xff]
    %v1581 = vld [vmem:[%s3 + $0x2c8] sm:$0xff]
    %v1582 = vld [vmem:[%s3 + $0x2d0] sm:$0xff]
    %v1583 = vld [vmem:[%s3 + $0x2d8] sm:$0xff]
    %v1584 = vld [vmem:[%s3 + $0x2e0] sm:$0xff]
    %v1585 = vld [vmem:[%s3 + $0x2e8] sm:$0xff]
    %v1586 = vld [vmem:[%s3 + $0x2f0] sm:$0xff]
    %v1587 = vld [vmem:[%s3 + $0x2f8] sm:$0xff]
    %v1588 = vld [vmem:[%s3 + $0x300] sm:$0xff]
    %v1589 = vld [vmem:[%s3 + $0x308] sm:$0xff]
    %v1590 = vld [vmem:[%s3 + $0x310] sm:$0xff]
    %v1591 = vld [vmem:[%s3 + $0x318] sm:$0xff]
    %v1592 = vld [vmem:[%s3 + $0x320] sm:$0xff]
    %v1593 = vld [vmem:[%s3 + $0x328] sm:$0xff]
    %v1594 = vld [vmem:[%s3 + $0x330] sm:$0xff]
    %v1595 = vld [vmem:[%s3 + $0x338] sm:$0xff]
    %v1596 = vld [vmem:[%s3 + $0x340] sm:$0xff]
    %v1597 = vld [vmem:[%s3 + $0x348] sm:$0xff]
    %v1598 = vld [vmem:[%s3 + $0x350] sm:$0xff]
    %v1599 = vld [vmem:[%s3 + $0x358] sm:$0xff]
    %v1600 = vld [vmem:[%s3 + $0x360] sm:$0xff]
    %v1601 = vld [vmem:[%s3 + $0x368] sm:$0xff]
    %v1602 = vld [vmem:[%s3 + $0x370] sm:$0xff]
    %v1603 = vld [vmem:[%s3 + $0x378] sm:$0xff]
    %v1604 = vld [vmem:[%s3 + $0x380] sm:$0xff]
    %v1605 = vld [vmem:[%s3 + $0x388] sm:$0xff]
    %v1606 = vld [vmem:[%s3 + $0x390] sm:$0xff]
    %v1607 = vld [vmem:[%s3 + $0x398] sm:$0xff]
    %v1608 = vld [vmem:[%s3 + $0x3a0] sm:$0xff]
    %v1609 = vld [vmem:[%s3 + $0x3a8] sm:$0xff]
    %v1610 = vld [vmem:[%s3 + $0x3b0] sm:$0xff]
    %v1611 = vld [vmem:[%s3 + $0x3b8] sm:$0xff]
    %v1612 = vld [vmem:[%s3 + $0x3c0] sm:$0xff]
    %v1613 = vld [vmem:[%s3 + $0x3c8] sm:$0xff]
    %v1614 = vld [vmem:[%s3 + $0x3d0] sm:$0xff]
    %v1615 = vld [vmem:[%s3 + $0x3d8] sm:$0xff]
    %v1616 = vld [vmem:[%s3 + $0x3e0] sm:$0xff]
    %v1617 = vld [vmem:[%s3 + $0x3e8] sm:$0xff]
    %v1618 = vld [vmem:[%s3 + $0x3f0] sm:$0xff]
    %v1619 = vld [vmem:[%s3 + $0x3f8] sm:$0xff]
    %v1620 = vld [vmem:[%s4] sm:$0xf]
    %v1622 = vlaneseq
    %v1623 = vshrl.u32 %v1622, 7
    %v1624 = vsub.s32 0, %v1623
    %v1625 = vrot.slane %v1620, %v1624
    %v1626 = vlaneseq
    %v1627 = vshrl.u32 %v1626, 7
    %v1628 = vsub.s32 1, %v1627
    %v1629 = vrot.slane %v1620, %v1628
    %v1630 = vlaneseq
    %v1631 = vshrl.u32 %v1630, 7
    %v1632 = vsub.s32 2, %v1631
    %v1633 = vrot.slane %v1620, %v1632
    %v1634 = vlaneseq
    %v1635 = vshrl.u32 %v1634, 7
    %v1636 = vsub.s32 3, %v1635
    %v1637 = vrot.slane %v1620, %v1636
    %v1770 = vunpack.c.l.b16 %v1492
    %v1771 = vunpack.c.h.b16 %v1492
    %v1772 = vunpack.c.l.b16 %v1493
    %v1773 = vunpack.c.h.b16 %v1493
    %v1774 = vunpack.c.l.b16 %v1494
    %v1775 = vunpack.c.h.b16 %v1494
    %v1776 = vunpack.c.l.b16 %v1495
    %v1777 = vunpack.c.h.b16 %v1495
    %v1778 = vunpack.c.l.b16 %v1496
    %v1779 = vunpack.c.h.b16 %v1496
    %v1780 = vunpack.c.l.b16 %v1497
    %v1781 = vunpack.c.h.b16 %v1497
    %v1782 = vunpack.c.l.b16 %v1498
    %v1783 = vunpack.c.h.b16 %v1498
    %v1784 = vunpack.c.l.b16 %v1499
    %v1785 = vunpack.c.h.b16 %v1499
    %v1786 = vunpack.c.l.b16 %v1500
    %v1787 = vunpack.c.h.b16 %v1500
    %v1788 = vunpack.c.l.b16 %v1501
    %v1789 = vunpack.c.h.b16 %v1501
    %v1790 = vunpack.c.l.b16 %v1502
    %v1791 = vunpack.c.h.b16 %v1502
    %v1792 = vunpack.c.l.b16 %v1503
    %v1793 = vunpack.c.h.b16 %v1503
    %v1794 = vunpack.c.l.b16 %v1504
    %v1795 = vunpack.c.h.b16 %v1504
    %v1796 = vunpack.c.l.b16 %v1505
    %v1797 = vunpack.c.h.b16 %v1505
    %v1798 = vunpack.c.l.b16 %v1506
    %v1799 = vunpack.c.h.b16 %v1506
    %v1800 = vunpack.c.l.b16 %v1507
    %v1801 = vunpack.c.h.b16 %v1507
    %v1802 = vunpack.c.l.b16 %v1508
    %v1803 = vunpack.c.h.b16 %v1508
    %v1804 = vunpack.c.l.b16 %v1509
    %v1805 = vunpack.c.h.b16 %v1509
    %v1806 = vunpack.c.l.b16 %v1510
    %v1807 = vunpack.c.h.b16 %v1510
    %v1808 = vunpack.c.l.b16 %v1511
    %v1809 = vunpack.c.h.b16 %v1511
    %v1810 = vunpack.c.l.b16 %v1512
    %v1811 = vunpack.c.h.b16 %v1512
    %v1812 = vunpack.c.l.b16 %v1513
    %v1813 = vunpack.c.h.b16 %v1513
    %v1814 = vunpack.c.l.b16 %v1514
    %v1815 = vunpack.c.h.b16 %v1514
    %v1816 = vunpack.c.l.b16 %v1515
    %v1817 = vunpack.c.h.b16 %v1515
    %v1818 = vunpack.c.l.b16 %v1516
    %v1819 = vunpack.c.h.b16 %v1516
    %v1820 = vunpack.c.l.b16 %v1517
    %v1821 = vunpack.c.h.b16 %v1517
    %v1822 = vunpack.c.l.b16 %v1518
    %v1823 = vunpack.c.h.b16 %v1518
    %v1824 = vunpack.c.l.b16 %v1519
    %v1825 = vunpack.c.h.b16 %v1519
    %v1826 = vunpack.c.l.b16 %v1520
    %v1827 = vunpack.c.h.b16 %v1520
    %v1828 = vunpack.c.l.b16 %v1521
    %v1829 = vunpack.c.h.b16 %v1521
    %v1830 = vunpack.c.l.b16 %v1522
    %v1831 = vunpack.c.h.b16 %v1522
    %v1832 = vunpack.c.l.b16 %v1523
    %v1833 = vunpack.c.h.b16 %v1523
    %v1834 = vunpack.c.l.b16 %v1524
    %v1835 = vunpack.c.h.b16 %v1524
    %v1836 = vunpack.c.l.b16 %v1525
    %v1837 = vunpack.c.h.b16 %v1525
    %v1838 = vunpack.c.l.b16 %v1526
    %v1839 = vunpack.c.h.b16 %v1526
    %v1840 = vunpack.c.l.b16 %v1527
    %v1841 = vunpack.c.h.b16 %v1527
    %v1842 = vunpack.c.l.b16 %v1528
    %v1843 = vunpack.c.h.b16 %v1528
    %v1844 = vunpack.c.l.b16 %v1529
    %v1845 = vunpack.c.h.b16 %v1529
    %v1846 = vunpack.c.l.b16 %v1530
    %v1847 = vunpack.c.h.b16 %v1530
    %v1848 = vunpack.c.l.b16 %v1531
    %v1849 = vunpack.c.h.b16 %v1531
    %v1850 = vunpack.c.l.b16 %v1532
    %v1851 = vunpack.c.h.b16 %v1532
    %v1852 = vunpack.c.l.b16 %v1533
    %v1853 = vunpack.c.h.b16 %v1533
    %v1854 = vunpack.c.l.b16 %v1534
    %v1855 = vunpack.c.h.b16 %v1534
    %v1856 = vunpack.c.l.b16 %v1535
    %v1857 = vunpack.c.h.b16 %v1535
    %v1858 = vunpack.c.l.b16 %v1536
    %v1859 = vunpack.c.h.b16 %v1536
    %v1860 = vunpack.c.l.b16 %v1537
    %v1861 = vunpack.c.h.b16 %v1537
    %v1862 = vunpack.c.l.b16 %v1538
    %v1863 = vunpack.c.h.b16 %v1538
    %v1864 = vunpack.c.l.b16 %v1539
    %v1865 = vunpack.c.h.b16 %v1539
    %v1866 = vunpack.c.l.b16 %v1540
    %v1867 = vunpack.c.h.b16 %v1540
    %v1868 = vunpack.c.l.b16 %v1541
    %v1869 = vunpack.c.h.b16 %v1541
    %v1870 = vunpack.c.l.b16 %v1542
    %v1871 = vunpack.c.h.b16 %v1542
    %v1872 = vunpack.c.l.b16 %v1543
    %v1873 = vunpack.c.h.b16 %v1543
    %v1874 = vunpack.c.l.b16 %v1544
    %v1875 = vunpack.c.h.b16 %v1544
    %v1876 = vunpack.c.l.b16 %v1545
    %v1877 = vunpack.c.h.b16 %v1545
    %v1878 = vunpack.c.l.b16 %v1546
    %v1879 = vunpack.c.h.b16 %v1546
    %v1880 = vunpack.c.l.b16 %v1547
    %v1881 = vunpack.c.h.b16 %v1547
    %v1882 = vunpack.c.l.b16 %v1548
    %v1883 = vunpack.c.h.b16 %v1548
    %v1884 = vunpack.c.l.b16 %v1549
    %v1885 = vunpack.c.h.b16 %v1549
    %v1886 = vunpack.c.l.b16 %v1550
    %v1887 = vunpack.c.h.b16 %v1550
    %v1888 = vunpack.c.l.b16 %v1551
    %v1889 = vunpack.c.h.b16 %v1551
    %v1890 = vunpack.c.l.b16 %v1552
    %v1891 = vunpack.c.h.b16 %v1552
    %v1892 = vunpack.c.l.b16 %v1553
    %v1893 = vunpack.c.h.b16 %v1553
    %v1894 = vunpack.c.l.b16 %v1554
    %v1895 = vunpack.c.h.b16 %v1554
    %v1896 = vunpack.c.l.b16 %v1555
    %v1897 = vunpack.c.h.b16 %v1555
    %v1898 = vunpack.c.l.b16 %v1556
    %v1899 = vunpack.c.h.b16 %v1556
    %v1900 = vunpack.c.l.b16 %v1557
    %v1901 = vunpack.c.h.b16 %v1557
    %v1902 = vunpack.c.l.b16 %v1558
    %v1903 = vunpack.c.h.b16 %v1558
    %v1904 = vunpack.c.l.b16 %v1559
    %v1905 = vunpack.c.h.b16 %v1559
    %v1906 = vunpack.c.l.b16 %v1560
    %v1907 = vunpack.c.h.b16 %v1560
    %v1908 = vunpack.c.l.b16 %v1561
    %v1909 = vunpack.c.h.b16 %v1561
    %v1910 = vunpack.c.l.b16 %v1562
    %v1911 = vunpack.c.h.b16 %v1562
    %v1912 = vunpack.c.l.b16 %v1563
    %v1913 = vunpack.c.h.b16 %v1563
    %v1914 = vunpack.c.l.b16 %v1564
    %v1915 = vunpack.c.h.b16 %v1564
    %v1916 = vunpack.c.l.b16 %v1565
    %v1917 = vunpack.c.h.b16 %v1565
    %v1918 = vunpack.c.l.b16 %v1566
    %v1919 = vunpack.c.h.b16 %v1566
    %v1920 = vunpack.c.l.b16 %v1567
    %v1921 = vunpack.c.h.b16 %v1567
    %v1922 = vunpack.c.l.b16 %v1568
    %v1923 = vunpack.c.h.b16 %v1568
    %v1924 = vunpack.c.l.b16 %v1569
    %v1925 = vunpack.c.h.b16 %v1569
    %v1926 = vunpack.c.l.b16 %v1570
    %v1927 = vunpack.c.h.b16 %v1570
    %v1928 = vunpack.c.l.b16 %v1571
    %v1929 = vunpack.c.h.b16 %v1571
    %v1930 = vunpack.c.l.b16 %v1572
    %v1931 = vunpack.c.h.b16 %v1572
    %v1932 = vunpack.c.l.b16 %v1573
    %v1933 = vunpack.c.h.b16 %v1573
    %v1934 = vunpack.c.l.b16 %v1574
    %v1935 = vunpack.c.h.b16 %v1574
    %v1936 = vunpack.c.l.b16 %v1575
    %v1937 = vunpack.c.h.b16 %v1575
    %v1938 = vunpack.c.l.b16 %v1576
    %v1939 = vunpack.c.h.b16 %v1576
    %v1940 = vunpack.c.l.b16 %v1577
    %v1941 = vunpack.c.h.b16 %v1577
    %v1942 = vunpack.c.l.b16 %v1578
    %v1943 = vunpack.c.h.b16 %v1578
    %v1944 = vunpack.c.l.b16 %v1579
    %v1945 = vunpack.c.h.b16 %v1579
    %v1946 = vunpack.c.l.b16 %v1580
    %v1947 = vunpack.c.h.b16 %v1580
    %v1948 = vunpack.c.l.b16 %v1581
    %v1949 = vunpack.c.h.b16 %v1581
    %v1950 = vunpack.c.l.b16 %v1582
    %v1951 = vunpack.c.h.b16 %v1582
    %v1952 = vunpack.c.l.b16 %v1583
    %v1953 = vunpack.c.h.b16 %v1583
    %v1954 = vunpack.c.l.b16 %v1584
    %v1955 = vunpack.c.h.b16 %v1584
    %v1956 = vunpack.c.l.b16 %v1585
    %v1957 = vunpack.c.h.b16 %v1585
    %v1958 = vunpack.c.l.b16 %v1586
    %v1959 = vunpack.c.h.b16 %v1586
    %v1960 = vunpack.c.l.b16 %v1587
    %v1961 = vunpack.c.h.b16 %v1587
    %v1962 = vunpack.c.l.b16 %v1588
    %v1963 = vunpack.c.h.b16 %v1588
    %v1964 = vunpack.c.l.b16 %v1589
    %v1965 = vunpack.c.h.b16 %v1589
    %v1966 = vunpack.c.l.b16 %v1590
    %v1967 = vunpack.c.h.b16 %v1590
    %v1968 = vunpack.c.l.b16 %v1591
    %v1969 = vunpack.c.h.b16 %v1591
    %v1970 = vunpack.c.l.b16 %v1592
    %v1971 = vunpack.c.h.b16 %v1592
    %v1972 = vunpack.c.l.b16 %v1593
    %v1973 = vunpack.c.h.b16 %v1593
    %v1974 = vunpack.c.l.b16 %v1594
    %v1975 = vunpack.c.h.b16 %v1594
    %v1976 = vunpack.c.l.b16 %v1595
    %v1977 = vunpack.c.h.b16 %v1595
    %v1978 = vunpack.c.l.b16 %v1596
    %v1979 = vunpack.c.h.b16 %v1596
    %v1980 = vunpack.c.l.b16 %v1597
    %v1981 = vunpack.c.h.b16 %v1597
    %v1982 = vunpack.c.l.b16 %v1598
    %v1983 = vunpack.c.h.b16 %v1598
    %v1984 = vunpack.c.l.b16 %v1599
    %v1985 = vunpack.c.h.b16 %v1599
    %v1986 = vunpack.c.l.b16 %v1600
    %v1987 = vunpack.c.h.b16 %v1600
    %v1988 = vunpack.c.l.b16 %v1601
    %v1989 = vunpack.c.h.b16 %v1601
    %v1990 = vunpack.c.l.b16 %v1602
    %v1991 = vunpack.c.h.b16 %v1602
    %v1992 = vunpack.c.l.b16 %v1603
    %v1993 = vunpack.c.h.b16 %v1603
    %v1994 = vunpack.c.l.b16 %v1604
    %v1995 = vunpack.c.h.b16 %v1604
    %v1996 = vunpack.c.l.b16 %v1605
    %v1997 = vunpack.c.h.b16 %v1605
    %v1998 = vunpack.c.l.b16 %v1606
    %v1999 = vunpack.c.h.b16 %v1606
    %v2000 = vunpack.c.l.b16 %v1607
    %v2001 = vunpack.c.h.b16 %v1607
    %v2002 = vunpack.c.l.b16 %v1608
    %v2003 = vunpack.c.h.b16 %v1608
    %v2004 = vunpack.c.l.b16 %v1609
    %v2005 = vunpack.c.h.b16 %v1609
    %v2006 = vunpack.c.l.b16 %v1610
    %v2007 = vunpack.c.h.b16 %v1610
    %v2008 = vunpack.c.l.b16 %v1611
    %v2009 = vunpack.c.h.b16 %v1611
    %v2010 = vunpack.c.l.b16 %v1612
    %v2011 = vunpack.c.h.b16 %v1612
    %v2012 = vunpack.c.l.b16 %v1613
    %v2013 = vunpack.c.h.b16 %v1613
    %v2014 = vunpack.c.l.b16 %v1614
    %v2015 = vunpack.c.h.b16 %v1614
    %v2016 = vunpack.c.l.b16 %v1615
    %v2017 = vunpack.c.h.b16 %v1615
    %v2018 = vunpack.c.l.b16 %v1616
    %v2019 = vunpack.c.h.b16 %v1616
    %v2020 = vunpack.c.l.b16 %v1617
    %v2021 = vunpack.c.h.b16 %v1617
    %v2022 = vunpack.c.l.b16 %v1618
    %v2023 = vunpack.c.h.b16 %v1618
    %v2024 = vunpack.c.l.b16 %v1619
    %v2025 = vunpack.c.h.b16 %v1619
    %v2026 = vpack.c.b16 %v1774, %v1770
    %v2027 = vpack.c.b16 %v1775, %v1771
    %v2028 = vpack.c.b16 %v1776, %v1772
    %v2029 = vpack.c.b16 %v1777, %v1773
    %v2030 = vpack.c.b16 %v1782, %v1778
    %v2031 = vpack.c.b16 %v1783, %v1779
    %v2032 = vpack.c.b16 %v1784, %v1780
    %v2033 = vpack.c.b16 %v1785, %v1781
    %v2034 = vpack.c.b16 %v1790, %v1786
    %v2035 = vpack.c.b16 %v1791, %v1787
    %v2036 = vpack.c.b16 %v1792, %v1788
    %v2037 = vpack.c.b16 %v1793, %v1789
    %v2038 = vpack.c.b16 %v1798, %v1794
    %v2039 = vpack.c.b16 %v1799, %v1795
    %v2040 = vpack.c.b16 %v1800, %v1796
    %v2041 = vpack.c.b16 %v1801, %v1797
    %v2042 = vpack.c.b16 %v1806, %v1802
    %v2043 = vpack.c.b16 %v1807, %v1803
    %v2044 = vpack.c.b16 %v1808, %v1804
    %v2045 = vpack.c.b16 %v1809, %v1805
    %v2046 = vpack.c.b16 %v1814, %v1810
    %v2047 = vpack.c.b16 %v1815, %v1811
    %v2048 = vpack.c.b16 %v1816, %v1812
    %v2049 = vpack.c.b16 %v1817, %v1813
    %v2050 = vpack.c.b16 %v1822, %v1818
    %v2051 = vpack.c.b16 %v1823, %v1819
    %v2052 = vpack.c.b16 %v1824, %v1820
    %v2053 = vpack.c.b16 %v1825, %v1821
    %v2054 = vpack.c.b16 %v1830, %v1826
    %v2055 = vpack.c.b16 %v1831, %v1827
    %v2056 = vpack.c.b16 %v1832, %v1828
    %v2057 = vpack.c.b16 %v1833, %v1829
    %v2058 = vpack.c.b16 %v1838, %v1834
    %v2059 = vpack.c.b16 %v1839, %v1835
    %v2060 = vpack.c.b16 %v1840, %v1836
    %v2061 = vpack.c.b16 %v1841, %v1837
    %v2062 = vpack.c.b16 %v1846, %v1842
    %v2063 = vpack.c.b16 %v1847, %v1843
    %v2064 = vpack.c.b16 %v1848, %v1844
    %v2065 = vpack.c.b16 %v1849, %v1845
    %v2066 = vpack.c.b16 %v1854, %v1850
    %v2067 = vpack.c.b16 %v1855, %v1851
    %v2068 = vpack.c.b16 %v1856, %v1852
    %v2069 = vpack.c.b16 %v1857, %v1853
    %v2070 = vpack.c.b16 %v1862, %v1858
    %v2071 = vpack.c.b16 %v1863, %v1859
    %v2072 = vpack.c.b16 %v1864, %v1860
    %v2073 = vpack.c.b16 %v1865, %v1861
    %v2074 = vpack.c.b16 %v1870, %v1866
    %v2075 = vpack.c.b16 %v1871, %v1867
    %v2076 = vpack.c.b16 %v1872, %v1868
    %v2077 = vpack.c.b16 %v1873, %v1869
    %v2078 = vpack.c.b16 %v1878, %v1874
    %v2079 = vpack.c.b16 %v1879, %v1875
    %v2080 = vpack.c.b16 %v1880, %v1876
    %v2081 = vpack.c.b16 %v1881, %v1877
    %v2082 = vpack.c.b16 %v1886, %v1882
    %v2083 = vpack.c.b16 %v1887, %v1883
    %v2084 = vpack.c.b16 %v1888, %v1884
    %v2085 = vpack.c.b16 %v1889, %v1885
    %v2086 = vpack.c.b16 %v1894, %v1890
    %v2087 = vpack.c.b16 %v1895, %v1891
    %v2088 = vpack.c.b16 %v1896, %v1892
    %v2089 = vpack.c.b16 %v1897, %v1893
    %v2090 = vpack.c.b16 %v1902, %v1898
    %v2091 = vpack.c.b16 %v1903, %v1899
    %v2092 = vpack.c.b16 %v1904, %v1900
    %v2093 = vpack.c.b16 %v1905, %v1901
    %v2094 = vpack.c.b16 %v1910, %v1906
    %v2095 = vpack.c.b16 %v1911, %v1907
    %v2096 = vpack.c.b16 %v1912, %v1908
    %v2097 = vpack.c.b16 %v1913, %v1909
    %v2098 = vpack.c.b16 %v1918, %v1914
    %v2099 = vpack.c.b16 %v1919, %v1915
    %v2100 = vpack.c.b16 %v1920, %v1916
    %v2101 = vpack.c.b16 %v1921, %v1917
    %v2102 = vpack.c.b16 %v1926, %v1922
    %v2103 = vpack.c.b16 %v1927, %v1923
    %v2104 = vpack.c.b16 %v1928, %v1924
    %v2105 = vpack.c.b16 %v1929, %v1925
    %v2106 = vpack.c.b16 %v1934, %v1930
    %v2107 = vpack.c.b16 %v1935, %v1931
    %v2108 = vpack.c.b16 %v1936, %v1932
    %v2109 = vpack.c.b16 %v1937, %v1933
    %v2110 = vpack.c.b16 %v1942, %v1938
    %v2111 = vpack.c.b16 %v1943, %v1939
    %v2112 = vpack.c.b16 %v1944, %v1940
    %v2113 = vpack.c.b16 %v1945, %v1941
    %v2114 = vpack.c.b16 %v1950, %v1946
    %v2115 = vpack.c.b16 %v1951, %v1947
    %v2116 = vpack.c.b16 %v1952, %v1948
    %v2117 = vpack.c.b16 %v1953, %v1949
    %v2118 = vpack.c.b16 %v1958, %v1954
    %v2119 = vpack.c.b16 %v1959, %v1955
    %v2120 = vpack.c.b16 %v1960, %v1956
    %v2121 = vpack.c.b16 %v1961, %v1957
    %v2122 = vpack.c.b16 %v1966, %v1962
    %v2123 = vpack.c.b16 %v1967, %v1963
    %v2124 = vpack.c.b16 %v1968, %v1964
    %v2125 = vpack.c.b16 %v1969, %v1965
    %v2126 = vpack.c.b16 %v1974, %v1970
    %v2127 = vpack.c.b16 %v1975, %v1971
    %v2128 = vpack.c.b16 %v1976, %v1972
    %v2129 = vpack.c.b16 %v1977, %v1973
    %v2130 = vpack.c.b16 %v1982, %v1978
    %v2131 = vpack.c.b16 %v1983, %v1979
    %v2132 = vpack.c.b16 %v1984, %v1980
    %v2133 = vpack.c.b16 %v1985, %v1981
    %v2134 = vpack.c.b16 %v1990, %v1986
    %v2135 = vpack.c.b16 %v1991, %v1987
    %v2136 = vpack.c.b16 %v1992, %v1988
    %v2137 = vpack.c.b16 %v1993, %v1989
    %v2138 = vpack.c.b16 %v1998, %v1994
    %v2139 = vpack.c.b16 %v1999, %v1995
    %v2140 = vpack.c.b16 %v2000, %v1996
    %v2141 = vpack.c.b16 %v2001, %v1997
    %v2142 = vpack.c.b16 %v2006, %v2002
    %v2143 = vpack.c.b16 %v2007, %v2003
    %v2144 = vpack.c.b16 %v2008, %v2004
    %v2145 = vpack.c.b16 %v2009, %v2005
    %v2146 = vpack.c.b16 %v2014, %v2010
    %v2147 = vpack.c.b16 %v2015, %v2011
    %v2148 = vpack.c.b16 %v2016, %v2012
    %v2149 = vpack.c.b16 %v2017, %v2013
    %v2150 = vpack.c.b16 %v2022, %v2018
    %v2151 = vpack.c.b16 %v2023, %v2019
    %v2152 = vpack.c.b16 %v2024, %v2020
    %v2153 = vpack.c.b16 %v2025, %v2021
    %2282 = vmatprep.subr.bf16.mxu0 %v2055
    %2283 = vmatpush1.bf16.msra.mxu0 %v2054
    %2284 = vmatprep.subr.bf16.mxu0 %v2051
    %2285 = vmatpush1.bf16.msra.mxu0 %v2050
    %2286 = vmatprep.subr.bf16.mxu0 %v2047
    %2287 = vmatpush1.bf16.msra.mxu0 %v2046
    %2288 = vmatprep.subr.bf16.mxu0 %v2043
    %2289 = vmatpush1.bf16.msra.mxu0 %v2042
    %2290 = vmatprep.subr.bf16.mxu0 %v2039
    %2291 = vmatpush1.bf16.msra.mxu0 %v2038
    %2292 = vmatprep.subr.bf16.mxu0 %v2035
    %2293 = vmatpush1.bf16.msra.mxu0 %v2034
    %2294 = vmatprep.subr.bf16.mxu0 %v2031
    %2295 = vmatpush1.bf16.msra.mxu0 %v2030
    %2296 = vmatprep.subr.bf16.mxu0 %v2027
    %2297 = vmatpush1.bf16.msra.mxu0 %v2026
    %2298 = vmatprep.subr.bf16.mxu0 %v2087
    %2299 = vmatpush2.bf16.msra.mxu0 %v2086
    %2300 = vmatprep.subr.bf16.mxu0 %v2083
    %2301 = vmatpush2.bf16.msra.mxu0 %v2082
    %2302 = vmatprep.subr.bf16.mxu0 %v2079
    %2303 = vmatpush2.bf16.msra.mxu0 %v2078
    %2304 = vmatprep.subr.bf16.mxu0 %v2075
    %2305 = vmatpush2.bf16.msra.mxu0 %v2074
    %2306 = vmatprep.subr.bf16.mxu0 %v2071
    %2307 = vmatpush2.bf16.msra.mxu0 %v2070
    %2308 = vmatprep.subr.bf16.mxu0 %v2067
    %2309 = vmatpush2.bf16.msra.mxu0 %v2066
    %2310 = vmatprep.subr.bf16.mxu0 %v2063
    %2311 = vmatpush2.bf16.msra.mxu0 %v2062
    %2312 = vmatprep.subr.bf16.mxu0 %v2059
    %2313 = vmatpush2.bf16.msra.mxu0 %v2058
    %2314 = vmatprep.mubr.bf16.mxu0 %v1489
    %2315 = vmatmul.mubr.bf16.gmra.mxu0 %v1488
    %v2316 = vpop.f32.mrf.mxu0
    %v2317 = vadd.f32 %v1625, %v2316
    %v2318 = vpop.f32.mrf.mxu0
    %v2319 = vadd.f32 %v1629, %v2318
    %v2320 = vpop.f32.mrf.mxu0
    %v2321 = vpop.f32.mrf.mxu0
    %2322 = vdwg.mxu0
    %2323 = vmatprep.subr.bf16.mxu0 %v2119
    %2324 = vmatpush1.bf16.msra.mxu0 %v2118
    %2325 = vmatprep.subr.bf16.mxu0 %v2115
    %2326 = vmatpush1.bf16.msra.mxu0 %v2114
    %2327 = vmatprep.subr.bf16.mxu0 %v2111
    %2328 = vmatpush1.bf16.msra.mxu0 %v2110
    %2329 = vmatprep.subr.bf16.mxu0 %v2107
    %2330 = vmatpush1.bf16.msra.mxu0 %v2106
    %2331 = vmatprep.subr.bf16.mxu0 %v2103
    %2332 = vmatpush1.bf16.msra.mxu0 %v2102
    %2333 = vmatprep.subr.bf16.mxu0 %v2099
    %2334 = vmatpush1.bf16.msra.mxu0 %v2098
    %2335 = vmatprep.subr.bf16.mxu0 %v2095
    %2336 = vmatpush1.bf16.msra.mxu0 %v2094
    %2337 = vmatprep.subr.bf16.mxu0 %v2091
    %2338 = vmatpush1.bf16.msra.mxu0 %v2090
    %2339 = vmatprep.subr.bf16.mxu0 %v2151
    %2340 = vmatpush2.bf16.msra.mxu0 %v2150
    %2341 = vmatprep.subr.bf16.mxu0 %v2147
    %2342 = vmatpush2.bf16.msra.mxu0 %v2146
    %2343 = vmatprep.subr.bf16.mxu0 %v2143
    %2344 = vmatpush2.bf16.msra.mxu0 %v2142
    %2345 = vmatprep.subr.bf16.mxu0 %v2139
    %2346 = vmatpush2.bf16.msra.mxu0 %v2138
    %2347 = vmatprep.subr.bf16.mxu0 %v2135
    %2348 = vmatpush2.bf16.msra.mxu0 %v2134
    %2349 = vmatprep.subr.bf16.mxu0 %v2131
    %2350 = vmatpush2.bf16.msra.mxu0 %v2130
    %2351 = vmatprep.subr.bf16.mxu0 %v2127
    %2352 = vmatpush2.bf16.msra.mxu0 %v2126
    %2353 = vmatprep.subr.bf16.mxu0 %v2123
    %2354 = vmatpush2.bf16.msra.mxu0 %v2122
    %2355 = vmatprep.mubr.bf16.mxu0 %v1491
    %2356 = vmatmul.mubr.bf16.gmra.mxu0 %v1490
    %v2357 = vpop.f32.mrf.mxu0
    %v2358 = vadd.f32 %v2317, %v2357
    %v2359 = vpop.f32.mrf.mxu0
    %v2360 = vadd.f32 %v2319, %v2359
    %v2361 = vpop.f32.mrf.mxu0
    %v2362 = vpop.f32.mrf.mxu0
    %2363 = vdwg.mxu0
    %2364 = vmatprep.subr.bf16.mxu0 %v2057
    %2365 = vmatpush1.bf16.msra.mxu0 %v2056
    %2366 = vmatprep.subr.bf16.mxu0 %v2053
    %2367 = vmatpush1.bf16.msra.mxu0 %v2052
    %2368 = vmatprep.subr.bf16.mxu0 %v2049
    %2369 = vmatpush1.bf16.msra.mxu0 %v2048
    %2370 = vmatprep.subr.bf16.mxu0 %v2045
    %2371 = vmatpush1.bf16.msra.mxu0 %v2044
    %2372 = vmatprep.subr.bf16.mxu0 %v2041
    %2373 = vmatpush1.bf16.msra.mxu0 %v2040
    %2374 = vmatprep.subr.bf16.mxu0 %v2037
    %2375 = vmatpush1.bf16.msra.mxu0 %v2036
    %2376 = vmatprep.subr.bf16.mxu0 %v2033
    %2377 = vmatpush1.bf16.msra.mxu0 %v2032
    %2378 = vmatprep.subr.bf16.mxu0 %v2029
    %2379 = vmatpush1.bf16.msra.mxu0 %v2028
    %2380 = vmatprep.subr.bf16.mxu0 %v2089
    %2381 = vmatpush2.bf16.msra.mxu0 %v2088
    %2382 = vmatprep.subr.bf16.mxu0 %v2085
    %2383 = vmatpush2.bf16.msra.mxu0 %v2084
    %2384 = vmatprep.subr.bf16.mxu0 %v2081
    %2385 = vmatpush2.bf16.msra.mxu0 %v2080
    %2386 = vmatprep.subr.bf16.mxu0 %v2077
    %2387 = vmatpush2.bf16.msra.mxu0 %v2076
    %2388 = vmatprep.subr.bf16.mxu0 %v2073
    %2389 = vmatpush2.bf16.msra.mxu0 %v2072
    %2390 = vmatprep.subr.bf16.mxu0 %v2069
    %2391 = vmatpush2.bf16.msra.mxu0 %v2068
    %2392 = vmatprep.subr.bf16.mxu0 %v2065
    %2393 = vmatpush2.bf16.msra.mxu0 %v2064
    %2394 = vmatprep.subr.bf16.mxu0 %v2061
    %2395 = vmatpush2.bf16.msra.mxu0 %v2060
    %2396 = vmatprep.mubr.bf16.mxu0 %v1489
    %2397 = vmatmul.mubr.bf16.gmra.mxu0 %v1488
    %v2398 = vpop.f32.mrf.mxu0
    %v2399 = vadd.f32 %v1633, %v2398
    %v2400 = vpop.f32.mrf.mxu0
    %v2401 = vadd.f32 %v1637, %v2400
    %v2402 = vpop.f32.mrf.mxu0
    %v2403 = vpop.f32.mrf.mxu0
    %2404 = vdwg.mxu0
    %2405 = vmatprep.subr.bf16.mxu0 %v2121
    %2406 = vmatpush1.bf16.msra.mxu0 %v2120
    %2407 = vmatprep.subr.bf16.mxu0 %v2117
    %2408 = vmatpush1.bf16.msra.mxu0 %v2116
    %2409 = vmatprep.subr.bf16.mxu0 %v2113
    %2410 = vmatpush1.bf16.msra.mxu0 %v2112
    %2411 = vmatprep.subr.bf16.mxu0 %v2109
    %2412 = vmatpush1.bf16.msra.mxu0 %v2108
    %2413 = vmatprep.subr.bf16.mxu0 %v2105
    %2414 = vmatpush1.bf16.msra.mxu0 %v2104
    %2415 = vmatprep.subr.bf16.mxu0 %v2101
    %2416 = vmatpush1.bf16.msra.mxu0 %v2100
    %2417 = vmatprep.subr.bf16.mxu0 %v2097
    %2418 = vmatpush1.bf16.msra.mxu0 %v2096
    %2419 = vmatprep.subr.bf16.mxu0 %v2093
    %2420 = vmatpush1.bf16.msra.mxu0 %v2092
    %2421 = vmatprep.subr.bf16.mxu0 %v2153
    %2422 = vmatpush2.bf16.msra.mxu0 %v2152
    %2423 = vmatprep.subr.bf16.mxu0 %v2149
    %2424 = vmatpush2.bf16.msra.mxu0 %v2148
    %2425 = vmatprep.subr.bf16.mxu0 %v2145
    %2426 = vmatpush2.bf16.msra.mxu0 %v2144
    %2427 = vmatprep.subr.bf16.mxu0 %v2141
    %2428 = vmatpush2.bf16.msra.mxu0 %v2140
    %2429 = vmatprep.subr.bf16.mxu0 %v2137
    %2430 = vmatpush2.bf16.msra.mxu0 %v2136
    %2431 = vmatprep.subr.bf16.mxu0 %v2133
    %2432 = vmatpush2.bf16.msra.mxu0 %v2132
    %2433 = vmatprep.subr.bf16.mxu0 %v2129
    %2434 = vmatpush2.bf16.msra.mxu0 %v2128
    %2435 = vmatprep.subr.bf16.mxu0 %v2125
    %2436 = vmatpush2.bf16.msra.mxu0 %v2124
    %2437 = vmatprep.mubr.bf16.mxu0 %v1491
    %2438 = vmatmul.mubr.bf16.gmra.mxu0 %v1490
    %v2439 = vpop.f32.mrf.mxu0
    %v2440 = vadd.f32 %v2399, %v2439
    %v2441 = vpop.f32.mrf.mxu0
    %v2442 = vadd.f32 %v2401, %v2441
    %v2443 = vpop.f32.mrf.mxu0
    %v2444 = vpop.f32.mrf.mxu0
    %2445 = vdwg.mxu0
    %v2446 = vtanh.pop %v2358
    %v2447 = vtanh.pop %v2360
    %v2448 = vtanh.pop %v2440
    %v2449 = vtanh.pop %v2442
    %v2450 = vld [vmem:[%s5] sm:$0xf]
    %v2452 = vlaneseq
    %v2453 = vshrl.u32 %v2452, 7
    %v2454 = vsub.s32 0, %v2453
    %v2455 = vrot.slane %v2450, %v2454
    %v2456 = vlaneseq
    %v2457 = vshrl.u32 %v2456, 7
    %v2458 = vsub.s32 1, %v2457
    %v2459 = vrot.slane %v2450, %v2458
    %v2460 = vlaneseq
    %v2461 = vshrl.u32 %v2460, 7
    %v2462 = vsub.s32 2, %v2461
    %v2463 = vrot.slane %v2450, %v2462
    %v2464 = vlaneseq
    %v2465 = vshrl.u32 %v2464, 7
    %v2466 = vsub.s32 3, %v2465
    %v2467 = vrot.slane %v2450, %v2466
    %2472 = vmatprep.subr.mxu0 0.0
    %2473 = vmatpush1.xpose.msra.mxu0 0.0
    %2474 = vmatprep.subr.mxu0 0.0
    %2475 = vmatpush1.xpose.msra.mxu0 0.0
    %2476 = vmatprep.subr.mxu0 0.0
    %2477 = vmatpush1.xpose.msra.mxu0 0.0
    %2478 = vmatprep.subr.mxu0 0.0
    %2479 = vmatpush1.xpose.msra.mxu0 0.0
    %2480 = vmatprep.subr.mxu0 0.0
    %2481 = vmatpush1.xpose.msra.mxu0 0.0
    %2482 = vmatprep.subr.mxu0 0.0
    %2483 = vmatpush1.xpose.msra.mxu0 0.0
    %2484 = vmatprep.subr.mxu0 0.0
    %2485 = vmatpush1.xpose.msra.mxu0 0.0
    %2486 = vmatprep.subr.mxu0 0.0
    %2487 = vmatpush1.xpose.msra.mxu0 0.0
    %2488 = vmatprep.subr.mxu0 0.0
    %2489 = vmatpush1.xpose.msra.mxu0 0.0
    %2490 = vmatprep.subr.mxu0 0.0
    %2491 = vmatpush1.xpose.msra.mxu0 0.0
    %2492 = vmatprep.subr.mxu0 0.0
    %2493 = vmatpush1.xpose.msra.mxu0 0.0
    %2494 = vmatprep.subr.mxu0 0.0
    %2495 = vmatpush1.xpose.msra.mxu0 0.0
    %2496 = vmatprep.subr.mxu0 0.0
    %2497 = vmatpush1.xpose.msra.mxu0 0.0
    %2498 = vmatprep.subr.mxu0 0.0
    %2499 = vmatpush1.xpose.msra.mxu0 0.0
    %2500 = vmatprep.subr.mxu0 0.0
    %2501 = vmatpush1.xpose.msra.mxu0 0.0
    %2502 = vmatprep.subr.mxu0 %v2447
    %2503 = vmatpush1.xpose.msra.mxu0 %v2446
    %2504 = vmatprep.subr.mxu0 0.0
    %2505 = vmatpush2.xpose.msra.mxu0 0.0
    %2506 = vmatprep.subr.mxu0 0.0
    %2507 = vmatpush2.xpose.msra.mxu0 0.0
    %2508 = vmatprep.subr.mxu0 0.0
    %2509 = vmatpush2.xpose.msra.mxu0 0.0
    %2510 = vmatprep.subr.mxu0 0.0
    %2511 = vmatpush2.xpose.msra.mxu0 0.0
    %2512 = vmatprep.subr.mxu0 0.0
    %2513 = vmatpush2.xpose.msra.mxu0 0.0
    %2514 = vmatprep.subr.mxu0 0.0
    %2515 = vmatpush2.xpose.msra.mxu0 0.0
    %2516 = vmatprep.subr.mxu0 0.0
    %2517 = vmatpush2.xpose.msra.mxu0 0.0
    %2518 = vmatprep.subr.mxu0 0.0
    %2519 = vmatpush2.xpose.msra.mxu0 0.0
    %2520 = vmatprep.subr.mxu0 0.0
    %2521 = vmatpush2.xpose.msra.mxu0 0.0
    %2522 = vmatprep.subr.mxu0 0.0
    %2523 = vmatpush2.xpose.msra.mxu0 0.0
    %2524 = vmatprep.subr.mxu0 0.0
    %2525 = vmatpush2.xpose.msra.mxu0 0.0
    %2526 = vmatprep.subr.mxu0 0.0
    %2527 = vmatpush2.xpose.msra.mxu0 0.0
    %2528 = vmatprep.subr.mxu0 0.0
    %2529 = vmatpush2.xpose.msra.mxu0 0.0
    %2530 = vmatprep.subr.mxu0 0.0
    %2531 = vmatpush2.xpose.msra.mxu0 0.0
    %2532 = vmatprep.subr.mxu0 0.0
    %2533 = vmatpush2.xpose.msra.mxu0 0.0
    %2534 = vmatprep.subr.mxu0 0.0
    %2535 = vmatpush2.xpose.msra.mxu0 0.0
    %2536 = vmatprep.mubr.f32.mxu0 %v2459
    %2537 = vmatmul.mubr.f32.gmra.mxu0 %v2455
    %v2538 = vpop.f32.mrf.mxu0
    %v2539 = vadd.f32 0.0, %v2538
    %v2540 = vpop.f32.mrf.mxu0
    %2541 = vdwg.mxu0
    %2542 = vmatprep.subr.mxu0 0.0
    %2543 = vmatpush1.xpose.msra.mxu0 0.0
    %2544 = vmatprep.subr.mxu0 0.0
    %2545 = vmatpush1.xpose.msra.mxu0 0.0
    %2546 = vmatprep.subr.mxu0 0.0
    %2547 = vmatpush1.xpose.msra.mxu0 0.0
    %2548 = vmatprep.subr.mxu0 0.0
    %2549 = vmatpush1.xpose.msra.mxu0 0.0
    %2550 = vmatprep.subr.mxu0 0.0
    %2551 = vmatpush1.xpose.msra.mxu0 0.0
    %2552 = vmatprep.subr.mxu0 0.0
    %2553 = vmatpush1.xpose.msra.mxu0 0.0
    %2554 = vmatprep.subr.mxu0 0.0
    %2555 = vmatpush1.xpose.msra.mxu0 0.0
    %2556 = vmatprep.subr.mxu0 0.0
    %2557 = vmatpush1.xpose.msra.mxu0 0.0
    %2558 = vmatprep.subr.mxu0 0.0
    %2559 = vmatpush1.xpose.msra.mxu0 0.0
    %2560 = vmatprep.subr.mxu0 0.0
    %2561 = vmatpush1.xpose.msra.mxu0 0.0
    %2562 = vmatprep.subr.mxu0 0.0
    %2563 = vmatpush1.xpose.msra.mxu0 0.0
    %2564 = vmatprep.subr.mxu0 0.0
    %2565 = vmatpush1.xpose.msra.mxu0 0.0
    %2566 = vmatprep.subr.mxu0 0.0
    %2567 = vmatpush1.xpose.msra.mxu0 0.0
    %2568 = vmatprep.subr.mxu0 0.0
    %2569 = vmatpush1.xpose.msra.mxu0 0.0
    %2570 = vmatprep.subr.mxu0 0.0
    %2571 = vmatpush1.xpose.msra.mxu0 0.0
    %2572 = vmatprep.subr.mxu0 %v2449
    %2573 = vmatpush1.xpose.msra.mxu0 %v2448
    %2574 = vmatprep.subr.mxu0 0.0
    %2575 = vmatpush2.xpose.msra.mxu0 0.0
    %2576 = vmatprep.subr.mxu0 0.0
    %2577 = vmatpush2.xpose.msra.mxu0 0.0
    %2578 = vmatprep.subr.mxu0 0.0
    %2579 = vmatpush2.xpose.msra.mxu0 0.0
    %2580 = vmatprep.subr.mxu0 0.0
    %2581 = vmatpush2.xpose.msra.mxu0 0.0
    %2582 = vmatprep.subr.mxu0 0.0
    %2583 = vmatpush2.xpose.msra.mxu0 0.0
    %2584 = vmatprep.subr.mxu0 0.0
    %2585 = vmatpush2.xpose.msra.mxu0 0.0
    %2586 = vmatprep.subr.mxu0 0.0
    %2587 = vmatpush2.xpose.msra.mxu0 0.0
    %2588 = vmatprep.subr.mxu0 0.0
    %2589 = vmatpush2.xpose.msra.mxu0 0.0
    %2590 = vmatprep.subr.mxu0 0.0
    %2591 = vmatpush2.xpose.msra.mxu0 0.0
    %2592 = vmatprep.subr.mxu0 0.0
    %2593 = vmatpush2.xpose.msra.mxu0 0.0
    %2594 = vmatprep.subr.mxu0 0.0
    %2595 = vmatpush2.xpose.msra.mxu0 0.0
    %2596 = vmatprep.subr.mxu0 0.0
    %2597 = vmatpush2.xpose.msra.mxu0 0.0
    %2598 = vmatprep.subr.mxu0 0.0
    %2599 = vmatpush2.xpose.msra.mxu0 0.0
    %2600 = vmatprep.subr.mxu0 0.0
    %2601 = vmatpush2.xpose.msra.mxu0 0.0
    %2602 = vmatprep.subr.mxu0 0.0
    %2603 = vmatpush2.xpose.msra.mxu0 0.0
    %2604 = vmatprep.subr.mxu0 0.0
    %2605 = vmatpush2.xpose.msra.mxu0 0.0
    %2606 = vmatprep.mubr.f32.mxu0 %v2467
    %2607 = vmatmul.mubr.f32.gmra.mxu0 %v2463
    %v2608 = vpop.f32.mrf.mxu0
    %v2609 = vadd.f32 %v2539, %v2608
    %v2610 = vpop.f32.mrf.mxu0
    %2611 = vdwg.mxu0
    %vm2612 = vcmask 57344
    %v2613 = vsel %vm2612, %v2609, -inf
    %2614 = vmax.xlane.f32.xlu0 %v2613
    %v2615 = vpop.xlane.xlu0 %2614
    %v2616 = vsub.f32 %v2609, %v2615
    %v2617 = vmul.f32 %v2616, 1.442695
    %v2618 = vpow.pop %v2617
    %v2619 = vsel %vm2612, %v2618, 0.0
    %2620 = vadd.xlane.f32.xlu0 %v2619
    %v2621 = vpop.xlane.xlu0 %2620
    %v2622 = vrcp.pop %v2621
    %v2623 = vmul.f32 %v2618, %v2622
    %vm2624 = vcmask 64512
    %v2626 = vsel %vm2624, %v2623, 0
    %2628 = vmatprep.subr.mxu0 0.0
    %2629 = vmatpush1.msra.mxu0 0.0
    %2630 = vmatprep.subr.mxu0 0.0
    %2631 = vmatpush1.msra.mxu0 0.0
    %2632 = vmatprep.subr.mxu0 0.0
    %2633 = vmatpush1.msra.mxu0 0.0
    %2634 = vmatprep.subr.mxu0 0.0
    %2635 = vmatpush1.msra.mxu0 0.0
    %2636 = vmatprep.subr.mxu0 0.0
    %2637 = vmatpush1.msra.mxu0 0.0
    %2638 = vmatprep.subr.mxu0 0.0
    %2639 = vmatpush1.msra.mxu0 0.0
    %2640 = vmatprep.subr.mxu0 0.0
    %2641 = vmatpush1.msra.mxu0 0.0
    %2642 = vmatprep.subr.mxu0 0.0
    %2643 = vmatpush1.msra.mxu0 0.0
    %2644 = vmatprep.subr.mxu0 0.0
    %2645 = vmatpush1.msra.mxu0 0.0
    %2646 = vmatprep.subr.mxu0 0.0
    %2647 = vmatpush1.msra.mxu0 0.0
    %2648 = vmatprep.subr.mxu0 0.0
    %2649 = vmatpush1.msra.mxu0 0.0
    %2650 = vmatprep.subr.mxu0 0.0
    %2651 = vmatpush1.msra.mxu0 0.0
    %2652 = vmatprep.subr.mxu0 0.0
    %2653 = vmatpush1.msra.mxu0 0.0
    %2654 = vmatprep.subr.mxu0 0.0
    %2655 = vmatpush1.msra.mxu0 0.0
    %2656 = vmatprep.subr.mxu0 0.0
    %2657 = vmatpush1.msra.mxu0 0.0
    %2658 = vmatprep.subr.mxu0 %v2447
    %2659 = vmatpush1.msra.mxu0 %v2446
    %2660 = vmatprep.subr.mxu0 0.0
    %2661 = vmatpush2.msra.mxu0 0.0
    %2662 = vmatprep.subr.mxu0 0.0
    %2663 = vmatpush2.msra.mxu0 0.0
    %2664 = vmatprep.subr.mxu0 0.0
    %2665 = vmatpush2.msra.mxu0 0.0
    %2666 = vmatprep.subr.mxu0 0.0
    %2667 = vmatpush2.msra.mxu0 0.0
    %2668 = vmatprep.subr.mxu0 0.0
    %2669 = vmatpush2.msra.mxu0 0.0
    %2670 = vmatprep.subr.mxu0 0.0
    %2671 = vmatpush2.msra.mxu0 0.0
    %2672 = vmatprep.subr.mxu0 0.0
    %2673 = vmatpush2.msra.mxu0 0.0
    %2674 = vmatprep.subr.mxu0 0.0
    %2675 = vmatpush2.msra.mxu0 0.0
    %2676 = vmatprep.subr.mxu0 0.0
    %2677 = vmatpush2.msra.mxu0 0.0
    %2678 = vmatprep.subr.mxu0 0.0
    %2679 = vmatpush2.msra.mxu0 0.0
    %2680 = vmatprep.subr.mxu0 0.0
    %2681 = vmatpush2.msra.mxu0 0.0
    %2682 = vmatprep.subr.mxu0 0.0
    %2683 = vmatpush2.msra.mxu0 0.0
    %2684 = vmatprep.subr.mxu0 0.0
    %2685 = vmatpush2.msra.mxu0 0.0
    %2686 = vmatprep.subr.mxu0 0.0
    %2687 = vmatpush2.msra.mxu0 0.0
    %2688 = vmatprep.subr.mxu0 0.0
    %2689 = vmatpush2.msra.mxu0 0.0
    %2690 = vmatprep.subr.mxu0 0.0
    %2691 = vmatpush2.msra.mxu0 0.0
    %2692 = vmatprep.mubr.f32.mxu0 0.0
    %2693 = vmatmul.mubr.f32.gmra.mxu0 %v2626
    %v2694 = vpop.f32.mrf.mxu0
    %v2695 = vadd.f32 0.0, %v2694
    %v2696 = vpop.f32.mrf.mxu0
    %v2697 = vadd.f32 0.0, %v2696
    %2698 = vdwg.mxu0
    %2699 = vmatprep.subr.mxu0 0.0
    %2700 = vmatpush1.msra.mxu0 0.0
    %2701 = vmatprep.subr.mxu0 0.0
    %2702 = vmatpush1.msra.mxu0 0.0
    %2703 = vmatprep.subr.mxu0 0.0
    %2704 = vmatpush1.msra.mxu0 0.0
    %2705 = vmatprep.subr.mxu0 0.0
    %2706 = vmatpush1.msra.mxu0 0.0
    %2707 = vmatprep.subr.mxu0 0.0
    %2708 = vmatpush1.msra.mxu0 0.0
    %2709 = vmatprep.subr.mxu0 0.0
    %2710 = vmatpush1.msra.mxu0 0.0
    %2711 = vmatprep.subr.mxu0 0.0
    %2712 = vmatpush1.msra.mxu0 0.0
    %2713 = vmatprep.subr.mxu0 0.0
    %2714 = vmatpush1.msra.mxu0 0.0
    %2715 = vmatprep.subr.mxu0 0.0
    %2716 = vmatpush1.msra.mxu0 0.0
    %2717 = vmatprep.subr.mxu0 0.0
    %2718 = vmatpush1.msra.mxu0 0.0
    %2719 = vmatprep.subr.mxu0 0.0
    %2720 = vmatpush1.msra.mxu0 0.0
    %2721 = vmatprep.subr.mxu0 0.0
    %2722 = vmatpush1.msra.mxu0 0.0
    %2723 = vmatprep.subr.mxu0 0.0
    %2724 = vmatpush1.msra.mxu0 0.0
    %2725 = vmatprep.subr.mxu0 0.0
    %2726 = vmatpush1.msra.mxu0 0.0
    %2727 = vmatprep.subr.mxu0 0.0
    %2728 = vmatpush1.msra.mxu0 0.0
    %2729 = vmatprep.subr.mxu0 %v2449
    %2730 = vmatpush1.msra.mxu0 %v2448
    %2731 = vmatprep.subr.mxu0 0.0
    %2732 = vmatpush2.msra.mxu0 0.0
    %2733 = vmatprep.subr.mxu0 0.0
    %2734 = vmatpush2.msra.mxu0 0.0
    %2735 = vmatprep.subr.mxu0 0.0
    %2736 = vmatpush2.msra.mxu0 0.0
    %2737 = vmatprep.subr.mxu0 0.0
    %2738 = vmatpush2.msra.mxu0 0.0
    %2739 = vmatprep.subr.mxu0 0.0
    %2740 = vmatpush2.msra.mxu0 0.0
    %2741 = vmatprep.subr.mxu0 0.0
    %2742 = vmatpush2.msra.mxu0 0.0
    %2743 = vmatprep.subr.mxu0 0.0
    %2744 = vmatpush2.msra.mxu0 0.0
    %2745 = vmatprep.subr.mxu0 0.0
    %2746 = vmatpush2.msra.mxu0 0.0
    %2747 = vmatprep.subr.mxu0 0.0
    %2748 = vmatpush2.msra.mxu0 0.0
    %2749 = vmatprep.subr.mxu0 0.0
    %2750 = vmatpush2.msra.mxu0 0.0
    %2751 = vmatprep.subr.mxu0 0.0
    %2752 = vmatpush2.msra.mxu0 0.0
    %2753 = vmatprep.subr.mxu0 0.0
    %2754 = vmatpush2.msra.mxu0 0.0
    %2755 = vmatprep.subr.mxu0 0.0
    %2756 = vmatpush2.msra.mxu0 0.0
    %2757 = vmatprep.subr.mxu0 0.0
    %2758 = vmatpush2.msra.mxu0 0.0
    %2759 = vmatprep.subr.mxu0 0.0
    %2760 = vmatpush2.msra.mxu0 0.0
    %2761 = vmatprep.subr.mxu0 0.0
    %2762 = vmatpush2.msra.mxu0 0.0
    %2763 = vmatprep.mubr.f32.mxu0 0.0
    %2764 = vmatmul.mubr.f32.gmra.mxu0 %v2626
    %v2765 = vpop.f32.mrf.mxu0
    %v2766 = vadd.f32 0.0, %v2765
    %v2767 = vpop.f32.mrf.mxu0
    %v2768 = vadd.f32 0.0, %v2767
    %2769 = vdwg.mxu0
    %v2770 = vld [vmem:[%s6] sm:$0xff]
    %v2771 = vld [vmem:[%s6 + $0x8] sm:$0xff]
    %v2772 = vld [vmem:[%s6 + $0x10] sm:$0xff]
    %v2773 = vld [vmem:[%s6 + $0x18] sm:$0xff]
    %v2774 = vld [vmem:[%s6 + $0x20] sm:$0xff]
    %v2775 = vld [vmem:[%s6 + $0x28] sm:$0xff]
    %v2776 = vld [vmem:[%s6 + $0x30] sm:$0xff]
    %v2777 = vld [vmem:[%s6 + $0x38] sm:$0xff]
    %v2778 = vld [vmem:[%s6 + $0x40] sm:$0xff]
    %v2779 = vld [vmem:[%s6 + $0x48] sm:$0xff]
    %v2780 = vld [vmem:[%s6 + $0x50] sm:$0xff]
    %v2781 = vld [vmem:[%s6 + $0x58] sm:$0xff]
    %v2782 = vld [vmem:[%s6 + $0x60] sm:$0xff]
    %v2783 = vld [vmem:[%s6 + $0x68] sm:$0xff]
    %v2784 = vld [vmem:[%s6 + $0x70] sm:$0xff]
    %v2785 = vld [vmem:[%s6 + $0x78] sm:$0xff]
    %v2786 = vld [vmem:[%s6 + $0x80] sm:$0xff]
    %v2787 = vld [vmem:[%s6 + $0x88] sm:$0xff]
    %v2788 = vld [vmem:[%s6 + $0x90] sm:$0xff]
    %v2789 = vld [vmem:[%s6 + $0x98] sm:$0xff]
    %v2790 = vld [vmem:[%s6 + $0xa0] sm:$0xff]
    %v2791 = vld [vmem:[%s6 + $0xa8] sm:$0xff]
    %v2792 = vld [vmem:[%s6 + $0xb0] sm:$0xff]
    %v2793 = vld [vmem:[%s6 + $0xb8] sm:$0xff]
    %v2794 = vld [vmem:[%s6 + $0xc0] sm:$0xff]
    %v2795 = vld [vmem:[%s6 + $0xc8] sm:$0xff]
    %v2796 = vld [vmem:[%s6 + $0xd0] sm:$0xff]
    %v2797 = vld [vmem:[%s6 + $0xd8] sm:$0xff]
    %v2798 = vld [vmem:[%s6 + $0xe0] sm:$0xff]
    %v2799 = vld [vmem:[%s6 + $0xe8] sm:$0xff]
    %v2800 = vld [vmem:[%s6 + $0xf0] sm:$0xff]
    %v2801 = vld [vmem:[%s6 + $0xf8] sm:$0xff]
    %v2802 = vld [vmem:[%s6 + $0x100] sm:$0xff]
    %v2803 = vld [vmem:[%s6 + $0x108] sm:$0xff]
    %v2804 = vld [vmem:[%s6 + $0x110] sm:$0xff]
    %v2805 = vld [vmem:[%s6 + $0x118] sm:$0xff]
    %v2806 = vld [vmem:[%s6 + $0x120] sm:$0xff]
    %v2807 = vld [vmem:[%s6 + $0x128] sm:$0xff]
    %v2808 = vld [vmem:[%s6 + $0x130] sm:$0xff]
    %v2809 = vld [vmem:[%s6 + $0x138] sm:$0xff]
    %v2810 = vld [vmem:[%s6 + $0x140] sm:$0xff]
    %v2811 = vld [vmem:[%s6 + $0x148] sm:$0xff]
    %v2812 = vld [vmem:[%s6 + $0x150] sm:$0xff]
    %v2813 = vld [vmem:[%s6 + $0x158] sm:$0xff]
    %v2814 = vld [vmem:[%s6 + $0x160] sm:$0xff]
    %v2815 = vld [vmem:[%s6 + $0x168] sm:$0xff]
    %v2816 = vld [vmem:[%s6 + $0x170] sm:$0xff]
    %v2817 = vld [vmem:[%s6 + $0x178] sm:$0xff]
    %v2818 = vld [vmem:[%s6 + $0x180] sm:$0xff]
    %v2819 = vld [vmem:[%s6 + $0x188] sm:$0xff]
    %v2820 = vld [vmem:[%s6 + $0x190] sm:$0xff]
    %v2821 = vld [vmem:[%s6 + $0x198] sm:$0xff]
    %v2822 = vld [vmem:[%s6 + $0x1a0] sm:$0xff]
    %v2823 = vld [vmem:[%s6 + $0x1a8] sm:$0xff]
    %v2824 = vld [vmem:[%s6 + $0x1b0] sm:$0xff]
    %v2825 = vld [vmem:[%s6 + $0x1b8] sm:$0xff]
    %v2826 = vld [vmem:[%s6 + $0x1c0] sm:$0xff]
    %v2827 = vld [vmem:[%s6 + $0x1c8] sm:$0xff]
    %v2828 = vld [vmem:[%s6 + $0x1d0] sm:$0xff]
    %v2829 = vld [vmem:[%s6 + $0x1d8] sm:$0xff]
    %v2830 = vld [vmem:[%s6 + $0x1e0] sm:$0xff]
    %v2831 = vld [vmem:[%s6 + $0x1e8] sm:$0xff]
    %v2832 = vld [vmem:[%s6 + $0x1f0] sm:$0xff]
    %v2833 = vld [vmem:[%s6 + $0x1f8] sm:$0xff]
    %v2834 = vld [vmem:[%s7] sm:$0x1]
    %2835 = vmatprep.subr.mxu0 0.0
    %2836 = vmatpush1.msra.mxu0 %v2785
    %2837 = vmatprep.subr.mxu0 0.0
    %2838 = vmatpush1.msra.mxu0 %v2784
    %2839 = vmatprep.subr.mxu0 0.0
    %2840 = vmatpush1.msra.mxu0 %v2783
    %2841 = vmatprep.subr.mxu0 0.0
    %2842 = vmatpush1.msra.mxu0 %v2782
    %2843 = vmatprep.subr.mxu0 0.0
    %2844 = vmatpush1.msra.mxu0 %v2781
    %2845 = vmatprep.subr.mxu0 0.0
    %2846 = vmatpush1.msra.mxu0 %v2780
    %2847 = vmatprep.subr.mxu0 0.0
    %2848 = vmatpush1.msra.mxu0 %v2779
    %2849 = vmatprep.subr.mxu0 0.0
    %2850 = vmatpush1.msra.mxu0 %v2778
    %2851 = vmatprep.subr.mxu0 0.0
    %2852 = vmatpush1.msra.mxu0 %v2777
    %2853 = vmatprep.subr.mxu0 0.0
    %2854 = vmatpush1.msra.mxu0 %v2776
    %2855 = vmatprep.subr.mxu0 0.0
    %2856 = vmatpush1.msra.mxu0 %v2775
    %2857 = vmatprep.subr.mxu0 0.0
    %2858 = vmatpush1.msra.mxu0 %v2774
    %2859 = vmatprep.subr.mxu0 0.0
    %2860 = vmatpush1.msra.mxu0 %v2773
    %2861 = vmatprep.subr.mxu0 0.0
    %2862 = vmatpush1.msra.mxu0 %v2772
    %2863 = vmatprep.subr.mxu0 0.0
    %2864 = vmatpush1.msra.mxu0 %v2771
    %2865 = vmatprep.subr.mxu0 0.0
    %2866 = vmatpush1.msra.mxu0 %v2770
    %2867 = vmatprep.subr.mxu0 0.0
    %2868 = vmatpush2.msra.mxu0 %v2801
    %2869 = vmatprep.subr.mxu0 0.0
    %2870 = vmatpush2.msra.mxu0 %v2800
    %2871 = vmatprep.subr.mxu0 0.0
    %2872 = vmatpush2.msra.mxu0 %v2799
    %2873 = vmatprep.subr.mxu0 0.0
    %2874 = vmatpush2.msra.mxu0 %v2798
    %2875 = vmatprep.subr.mxu0 0.0
    %2876 = vmatpush2.msra.mxu0 %v2797
    %2877 = vmatprep.subr.mxu0 0.0
    %2878 = vmatpush2.msra.mxu0 %v2796
    %2879 = vmatprep.subr.mxu0 0.0
    %2880 = vmatpush2.msra.mxu0 %v2795
    %2881 = vmatprep.subr.mxu0 0.0
    %2882 = vmatpush2.msra.mxu0 %v2794
    %2883 = vmatprep.subr.mxu0 0.0
    %2884 = vmatpush2.msra.mxu0 %v2793
    %2885 = vmatprep.subr.mxu0 0.0
    %2886 = vmatpush2.msra.mxu0 %v2792
    %2887 = vmatprep.subr.mxu0 0.0
    %2888 = vmatpush2.msra.mxu0 %v2791
    %2889 = vmatprep.subr.mxu0 0.0
    %2890 = vmatpush2.msra.mxu0 %v2790
    %2891 = vmatprep.subr.mxu0 0.0
    %2892 = vmatpush2.msra.mxu0 %v2789
    %2893 = vmatprep.subr.mxu0 0.0
    %2894 = vmatpush2.msra.mxu0 %v2788
    %2895 = vmatprep.subr.mxu0 0.0
    %2896 = vmatpush2.msra.mxu0 %v2787
    %2897 = vmatprep.subr.mxu0 0.0
    %2898 = vmatpush2.msra.mxu0 %v2786
    %2899 = vmatprep.mubr.f32.mxu0 %v2697
    %2900 = vmatmul.mubr.f32.gmra.mxu0 %v2695
    %v2901 = vpop.f32.mrf.mxu0
    %v2902 = vadd.f32 %v2834, %v2901
    %v2903 = vpop.f32.mrf.mxu0
    %2904 = vdwg.mxu0
    %2905 = vmatprep.subr.mxu0 0.0
    %2906 = vmatpush1.msra.mxu0 %v2817
    %2907 = vmatprep.subr.mxu0 0.0
    %2908 = vmatpush1.msra.mxu0 %v2816
    %2909 = vmatprep.subr.mxu0 0.0
    %2910 = vmatpush1.msra.mxu0 %v2815
    %2911 = vmatprep.subr.mxu0 0.0
    %2912 = vmatpush1.msra.mxu0 %v2814
    %2913 = vmatprep.subr.mxu0 0.0
    %2914 = vmatpush1.msra.mxu0 %v2813
    %2915 = vmatprep.subr.mxu0 0.0
    %2916 = vmatpush1.msra.mxu0 %v2812
    %2917 = vmatprep.subr.mxu0 0.0
    %2918 = vmatpush1.msra.mxu0 %v2811
    %2919 = vmatprep.subr.mxu0 0.0
    %2920 = vmatpush1.msra.mxu0 %v2810
    %2921 = vmatprep.subr.mxu0 0.0
    %2922 = vmatpush1.msra.mxu0 %v2809
    %2923 = vmatprep.subr.mxu0 0.0
    %2924 = vmatpush1.msra.mxu0 %v2808
    %2925 = vmatprep.subr.mxu0 0.0
    %2926 = vmatpush1.msra.mxu0 %v2807
    %2927 = vmatprep.subr.mxu0 0.0
    %2928 = vmatpush1.msra.mxu0 %v2806
    %2929 = vmatprep.subr.mxu0 0.0
    %2930 = vmatpush1.msra.mxu0 %v2805
    %2931 = vmatprep.subr.mxu0 0.0
    %2932 = vmatpush1.msra.mxu0 %v2804
    %2933 = vmatprep.subr.mxu0 0.0
    %2934 = vmatpush1.msra.mxu0 %v2803
    %2935 = vmatprep.subr.mxu0 0.0
    %2936 = vmatpush1.msra.mxu0 %v2802
    %2937 = vmatprep.subr.mxu0 0.0
    %2938 = vmatpush2.msra.mxu0 %v2833
    %2939 = vmatprep.subr.mxu0 0.0
    %2940 = vmatpush2.msra.mxu0 %v2832
    %2941 = vmatprep.subr.mxu0 0.0
    %2942 = vmatpush2.msra.mxu0 %v2831
    %2943 = vmatprep.subr.mxu0 0.0
    %2944 = vmatpush2.msra.mxu0 %v2830
    %2945 = vmatprep.subr.mxu0 0.0
    %2946 = vmatpush2.msra.mxu0 %v2829
    %2947 = vmatprep.subr.mxu0 0.0
    %2948 = vmatpush2.msra.mxu0 %v2828
    %2949 = vmatprep.subr.mxu0 0.0
    %2950 = vmatpush2.msra.mxu0 %v2827
    %2951 = vmatprep.subr.mxu0 0.0
    %2952 = vmatpush2.msra.mxu0 %v2826
    %2953 = vmatprep.subr.mxu0 0.0
    %2954 = vmatpush2.msra.mxu0 %v2825
    %2955 = vmatprep.subr.mxu0 0.0
    %2956 = vmatpush2.msra.mxu0 %v2824
    %2957 = vmatprep.subr.mxu0 0.0
    %2958 = vmatpush2.msra.mxu0 %v2823
    %2959 = vmatprep.subr.mxu0 0.0
    %2960 = vmatpush2.msra.mxu0 %v2822
    %2961 = vmatprep.subr.mxu0 0.0
    %2962 = vmatpush2.msra.mxu0 %v2821
    %2963 = vmatprep.subr.mxu0 0.0
    %2964 = vmatpush2.msra.mxu0 %v2820
    %2965 = vmatprep.subr.mxu0 0.0
    %2966 = vmatpush2.msra.mxu0 %v2819
    %2967 = vmatprep.subr.mxu0 0.0
    %2968 = vmatpush2.msra.mxu0 %v2818
    %2969 = vmatprep.mubr.f32.mxu0 %v2768
    %2970 = vmatmul.mubr.f32.gmra.mxu0 %v2766
    %v2971 = vpop.f32.mrf.mxu0
    %v2972 = vadd.f32 %v2902, %v2971
    %v2973 = vpop.f32.mrf.mxu0
    %2974 = vdwg.mxu0
    %v2975 = vmax.f32 %v2972, 0.0
    %v2976 = vld [vmem:[%s8] sm:$0x1]
    %v2977 = vmul.f32 %v2975, %v2976
    %vm2978 = vcmask 253952
    %v2979 = vsel %vm2978, %v2977, 0.0
    %2980 = vadd.xlane.f32.xlu0 %v2979
    %v2981 = vpop.xlane.xlu0 %2980
    %v2982 = vld [vmem:[#allocation2] sm:$0x1]
    %v2983 = vadd.f32 %v2981, %v2982
    %v2984 = vxor.u32 %v2983, 2147483648
    %v2985 = vmul.f32 %v2984, 1.442695
    %v2986 = vpow.pop %v2985
    %v2987 = vadd.f32 %v2986, 1.0
    %v2988 = vrcp.pop %v2987
    %v2989 = vmul.f32 1.0, %v2988
    %vm2990 = vcmask 0
    %2991 = vst.msk [vmem:[#allocation6] sm:$0x1] %vm2990, %v2989
    // Predicated region
    $region46: #{model_forward.1} parent=1 // pred_check
      _
    $region47: #{model_forward.1} parent=1 // pred_check_branch
      %2993 = sbr.rel (0) target = $region49
    $region48: #{model_forward.1} parent=1 // pred_region
      %s2995 = ssub.s32 16, 16
      %2996 = vsyncadd [#allocation5], %s2995
      %s2998 = sshll.u32 [#allocation6], 4
      %s2999 = int_to_ptr.vmem [resolvable:$true] %s2998
      %3001 = dma.vmem_to_hbm [thread:$0]  %s2999, 16, %s10, [#allocation5]
    $region49: #{model_forward.1} parent=1 // pred_fallthru
      _
    // Predicated region
    $region50: #{model_forward.1} parent=1 // pred_check
      _
    $region51: #{model_forward.1} parent=1 // pred_check_branch
      %3003 = sbr.rel (0) target = $region53
    $region52: #{model_forward.1} parent=1 // pred_region
      %3004 = dma.done [#allocation5], 16
    $region53: #{model_forward.1} parent=1 // pred_fallthru
      _
    %3005 = vsyncpa [#allocation4], 1
    %3006 = vsyncpa [#allocation5], 1

</llo_original>
